<compile_context>
chip_gen: v7x
topology: tpu7x:2x2x1
jax: 0.10.0
libtpu: 0.0.40
codegen_flags: <defaults>
</compile_context>

<pallas_src>
import math
import jax
import jax.numpy as jnp
import numpy as np
from jax.experimental import pallas as pl
from jax.experimental.pallas import tpu as pltpu

# ---- Block config (ModelArgs(d_model=n_embd), token_mixer='mamba-min') ----
D_MODEL = 32
EXPAND = 2
D_INNER = EXPAND * D_MODEL            # 64
D_STATE = 16
DT_RANK = math.ceil(D_MODEL / 16)     # 2
D_CONV = 4
X_DBL = DT_RANK + 2 * D_STATE         # 34
BATCH = 2
SEQ = 8
BT = BATCH * SEQ                      # 16
D_LANES = BATCH * D_INNER             # 128  (batch packed into lanes for the scan)
RMS_EPS = 1e-5
LN_EPS = 1e-5


def _sigmoid(x):
    # exact sigmoid via EUP tanh (avoids a VALU divide)
    return 0.5 * (jnp.tanh(0.5 * x) + 1.0)


def _silu(x):
    return x * _sigmoid(x)


def _softplus(x):
    # numerically stable softplus using only exp/log/abs/max (Mosaic-friendly)
    return jnp.maximum(x, 0.0) + jnp.log(1.0 + jnp.exp(-jnp.abs(x)))


def _gelu(x):
    # TODO(synk): PyTorch nn.GELU() is the exact erf GELU; tanh approximation used (no erf lowering).
    c = math.sqrt(2.0 / math.pi)
    return 0.5 * x * (1.0 + jnp.tanh(c * (x + 0.044715 * x * x * x)))


def _block_kernel(
    # inputs
    x_ref,       # (BT, D_MODEL)
    vec_ref,     # (32, 128) packed: rows 0..7 bias/scale vectors, 8..11 conv taps, 16..31 A^T (batch-tiled)
    wim_ref,     # (64, 128) rows 0:32 in_proj weight, rows 32:64 mlp fc1 weight
    wdb_ref,     # (96, 64)  rows 0:64 fused delta weight, rows 64:96 (B|C) projection^T
    wom_ref,     # (192, 32) rows 0:64 out_proj weight, rows 64:192 mlp fc2 weight
    shift_ref,   # (48, BT)  stacked causal shift-by-{1,2,3} 0/1 matrices (batch-isolated)
    sel_ref,     # (BT, SEQ*128) 0/1 lane-expansion matrix for B/C
    # output
    o_ref,       # (BT, D_MODEL)
    # scratch
    dA_scr,      # (SEQ, D_STATE, 128)
    dBu_scr,     # (SEQ, D_STATE, 128)
    bc_scr,      # (2*D_STATE, SEQ*128)
):
    x = x_ref[...]                                            # (16, 32)

    # ---- RMSNorm (norm_mamba) ----
    xn = x * jax.lax.rsqrt(jnp.mean(x * x, axis=-1, keepdims=True) + RMS_EPS)
    xn = xn * vec_ref[0:1, 0:D_MODEL]

    # ---- MambaBlock: in_proj (no bias), single (32,128) weight; xm/res = lane halves ----
    xr = jnp.dot(xn, wim_ref[0:D_MODEL, :], preferred_element_type=jnp.float32)  # (16, 128)
    xm = xr[:, :D_INNER]                                       # (16, 64)
    res = xr[:, D_INNER:]                                      # (16, 64)

    # ---- causal depthwise conv1d (kernel=4, groups=d_inner, pad=3, crop to T) ----
    # out[t] = sum_k w[k] * x[t - (3-k)] with zeros outside each length-SEQ segment.
    # Shifts come from one stacked (48,16) 0/1 matmul precomputed on the host.
    shifted = jnp.dot(shift_ref[...], xm, preferred_element_type=jnp.float32)     # (48, 64)
    acc = xm * vec_ref[11:12, 0:D_INNER]                       # tap k=3 (shift 0)
    acc = acc + shifted[0:BT, :] * vec_ref[10:11, 0:D_INNER]   # shift 1 -> tap 2
    acc = acc + shifted[BT:2 * BT, :] * vec_ref[9:10, 0:D_INNER]   # shift 2 -> tap 1
    acc = acc + shifted[2 * BT:3 * BT, :] * vec_ref[8:9, 0:D_INNER]  # shift 3 -> tap 0
    xc = _silu(acc + vec_ref[1:2, 0:D_INNER])                  # (16, 64)

    # ---- SSM inputs ----
    # B/C produced transposed ((2n, BT)), then ONE matmul against the 0/1 selection matrix
    # expands every (t, batch) value across its 64 channel lanes -> (2n, SEQ*128) in scratch.
    bct = jax.lax.dot_general(wdb_ref[D_INNER:, :], xc,
                              (((1,), (1,)), ((), ())),
                              preferred_element_type=jnp.float32)                 # (32, 16)
    bc_scr[...] = jnp.dot(bct, sel_ref[...], preferred_element_type=jnp.float32)  # (32, 1024)

    # delta: dt path fused offline (W_delta = x_proj[:, :dt_rank] @ dt_proj)
    delta = _softplus(
        jnp.dot(xc, wdb_ref[0:D_INNER, :], preferred_element_type=jnp.float32)
        + vec_ref[2:3, 0:D_INNER])                             # (16, 64)
    du = delta * xc                                            # (16, 64)

    # lane-pack batch: row b*SEQ+t -> (row t, lane half b)
    delta_pk = jnp.concatenate([delta[:SEQ, :], delta[SEQ:, :]], axis=1)   # (8, 128)
    du_pk = jnp.concatenate([du[:SEQ, :], du[SEQ:, :]], axis=1)            # (8, 128)
    a_pk = vec_ref[16:16 + D_STATE, :]                                     # (16, 128)

    # ---- bulk staging (off the serial chain): dA = exp(delta*A), dBu = delta*u*B ----
    for t in range(SEQ):
        if t > 0:   # h_0 starts from zero state, so dA_0 is never used
            dA_scr[t] = jnp.exp(delta_pk[t:t + 1, :] * a_pk)
        dBu_scr[t] = du_pk[t:t + 1, :] * bc_scr[0:D_STATE, t * D_LANES:(t + 1) * D_LANES]

    # ---- selective scan: 8 steps, per-step critical path = one mul+add on (16,128) ----
    ys = []
    h = dBu_scr[0]                                             # (16, 128)
    ys.append(jnp.sum(h * bc_scr[D_STATE:, 0:D_LANES], axis=0, keepdims=True))
    for t in range(1, SEQ):
        h = dA_scr[t] * h + dBu_scr[t]
        ys.append(jnp.sum(h * bc_scr[D_STATE:, t * D_LANES:(t + 1) * D_LANES],
                          axis=0, keepdims=True))
    y_pk = jnp.concatenate(ys, axis=0)                         # (8, 128)

    # unpack back to row layout (b*SEQ+t, d)
    y_ssm = jnp.concatenate([y_pk[:, :D_INNER], y_pk[:, D_INNER:]], axis=0)   # (16, 64)

    y = (y_ssm + xc * vec_ref[3:4, 0:D_INNER]) * _silu(res)    # + u*D, then SiLU gate
    mamba_out = jnp.dot(y, wom_ref[0:D_INNER, :], preferred_element_type=jnp.float32)  # (16, 32)

    x1 = x + mamba_out                                         # residual 1

    # ---- LayerNorm (ln2) + MLP channels ----
    mu = jnp.mean(x1, axis=-1, keepdims=True)
    var = jnp.mean((x1 - mu) * (x1 - mu), axis=-1, keepdims=True)
    xn2 = ((x1 - mu) * jax.lax.rsqrt(var + LN_EPS) * vec_ref[4:5, 0:D_MODEL]
           + vec_ref[5:6, 0:D_MODEL])
    h1 = _gelu(jnp.dot(xn2, wim_ref[D_MODEL:, :], preferred_element_type=jnp.float32)
               + vec_ref[6:7, :])
    mlp = (jnp.dot(h1, wom_ref[D_INNER:, :], preferred_element_type=jnp.float32)
           + vec_ref[7:8, 0:D_MODEL])

    o_ref[...] = x1 + mlp                                      # residual 2 (dropout = identity)


def block_forward(x, p):
    B, T, C = x.shape
    x2d = x.reshape(B * T, C)

    # ---- offline weight prep / packing (pure layout & algebra, done per call by XLA) ----
    a_t = (-jnp.exp(p['A_log'])).T                             # (n, d_inner)
    a_pk = jnp.concatenate([a_t, a_t], axis=1)                 # (n, 2*d_inner) batch-tiled
    wdelta = p['xproj_w'][:, :DT_RANK] @ p['dt_w']             # (d_inner, d_inner) fused dt path
    bc_wt = p['xproj_w'][:, DT_RANK:].T                        # (2n, d_inner)

    # one (32,128) slab: bias/scale vectors + conv taps + A^T
    vec = jnp.zeros((32, 128), jnp.float32)
    vec = vec.at[0, :D_MODEL].set(p['rms_w'])
    vec = vec.at[1, :D_INNER].set(p['conv_b'])
    vec = vec.at[2, :D_INNER].set(p['dt_b'])
    vec = vec.at[3, :D_INNER].set(p['D'])
    vec = vec.at[4, :D_MODEL].set(p['ln2_w'])
    vec = vec.at[5, :D_MODEL].set(p['ln2_b'])
    vec = vec.at[6, :].set(p['b1'])
    vec = vec.at[7, :D_MODEL].set(p['b2'])
    vec = vec.at[8:8 + D_CONV, :D_INNER].set(p['conv_w'])
    vec = vec.at[16:16 + D_STATE, :].set(a_pk)

    wim = jnp.concatenate([p['in_w'], p['w1']], axis=0)        # (64, 128)
    wdb = jnp.concatenate([wdelta, bc_wt], axis=0)             # (96, 64)
    wom = jnp.concatenate([p['out_w'], p['w2']], axis=0)       # (192, 32)

    # constant 0/1 matrices: causal depthwise-conv shifts and B/C lane expansion
    shift = np.zeros((3 * BT, BT), np.float32)
    for s in range(1, D_CONV):
        for i in range(BT):
            if (i % SEQ) >= s:
                shift[(s - 1) * BT + i, i - s] = 1.0
    sel = np.zeros((BT, SEQ * D_LANES), np.float32)
    for b in range(BATCH):
        for t in range(SEQ):
            sel[b * SEQ + t,
                t * D_LANES + b * D_INNER:t * D_LANES + (b + 1) * D_INNER] = 1.0
    shift = jnp.asarray(shift)
    sel = jnp.asarray(sel)

    vmem = pl.BlockSpec(memory_space=pltpu.MemorySpace.VMEM)   # whole array resident in VMEM
    fn = pl.pallas_call(
        _block_kernel,
        out_shape=jax.ShapeDtypeStruct((B * T, C), jnp.float32),
        in_specs=[vmem] * 7,
        out_specs=vmem,
        scratch_shapes=[
            pltpu.VMEM((SEQ, D_STATE, D_LANES), jnp.float32),   # dA
            pltpu.VMEM((SEQ, D_STATE, D_LANES), jnp.float32),   # dBu
            pltpu.VMEM((2 * D_STATE, SEQ * D_LANES), jnp.float32),  # lane-expanded B|C
        ],
        input_output_aliases={0: 0},
        cost_estimate=pl.CostEstimate(flops=2_000_000, transcendentals=22_000,
                                      bytes_accessed=170_000),
    )
    out2d = fn(x2d, vec, wim, wdb, wom, shift, sel)
    return out2d.reshape(B, T, C)


def init_params(key):
    ks = jax.random.split(key, 11)

    def uni(k, shape, fan_in):
        b = 1.0 / math.sqrt(fan_in)
        return jax.random.uniform(k, shape, jnp.float32, -b, b)

    # dt_proj init per MambaBlock.__init__
    dt_init_std = DT_RANK ** (-0.5)
    dt = jnp.exp(jax.random.uniform(ks[6], (D_INNER,), jnp.float32)
                 * (math.log(0.1) - math.log(0.001)) + math.log(0.001))
    dt = jnp.maximum(dt, 1e-4)
    inv_dt = dt + jnp.log(-jnp.expm1(-dt))

    A = jnp.tile(jnp.arange(1, D_STATE + 1, dtype=jnp.float32)[None, :], (D_INNER, 1))

    return dict(
        rms_w=jnp.ones((D_MODEL,), jnp.float32),
        in_w=uni(ks[0], (D_MODEL, 2 * D_INNER), D_MODEL),
        conv_w=uni(ks[1], (D_CONV, D_INNER), D_CONV),
        conv_b=uni(ks[2], (D_INNER,), D_CONV),
        xproj_w=uni(ks[3], (D_INNER, X_DBL), D_INNER),
        dt_w=jax.random.uniform(ks[4], (DT_RANK, D_INNER), jnp.float32,
                                -dt_init_std, dt_init_std),
        dt_b=inv_dt,
        A_log=jnp.log(A),
        D=jnp.ones((D_INNER,), jnp.float32),
        out_w=uni(ks[5], (D_INNER, D_MODEL), D_INNER),
        ln2_w=jnp.ones((D_MODEL,), jnp.float32),
        ln2_b=jnp.zeros((D_MODEL,), jnp.float32),
        w1=uni(ks[7], (D_MODEL, 4 * D_MODEL), D_MODEL),
        b1=uni(ks[8], (4 * D_MODEL,), D_MODEL),
        w2=uni(ks[9], (4 * D_MODEL, D_MODEL), 4 * D_MODEL),
        b2=uni(ks[10], (D_MODEL,), 4 * D_MODEL),
    )


def block_reference(x, p):
    """Pure-JAX reference of the same forward pass, faithful to the PyTorch module structure."""
    xn = x * jax.lax.rsqrt(jnp.mean(x * x, axis=-1, keepdims=True) + RMS_EPS) * p['rms_w']
    xr = xn @ p['in_w']
    xm, res = xr[..., :D_INNER], xr[..., D_INNER:]
    xpad = jnp.pad(xm, ((0, 0), (D_CONV - 1, 0), (0, 0)))
    conv = sum(xpad[:, k:k + SEQ, :] * p['conv_w'][k] for k in range(D_CONV))
    xc = _silu(conv + p['conv_b'])

    A = -jnp.exp(p['A_log'])
    x_dbl = xc @ p['xproj_w']
    delta_in = x_dbl[..., :DT_RANK]
    Bm = x_dbl[..., DT_RANK:DT_RANK + D_STATE]
    Cm = x_dbl[..., DT_RANK + D_STATE:]
    delta = _softplus(delta_in @ p['dt_w'] + p['dt_b'])
    dA = jnp.exp(delta[..., None] * A)
    dBu = delta[..., None] * Bm[:, :, None, :] * xc[..., None]

    def step(h, inp):
        dA_t, dBu_t, C_t = inp
        h = dA_t * h + dBu_t
        y = jnp.sum(h * C_t[:, None, :], axis=-1)
        return h, y

    h0 = jnp.zeros((x.shape[0], D_INNER, D_STATE), jnp.float32)
    _, ys = jax.lax.scan(step, h0, (dA.transpose(1, 0, 2, 3),
                                    dBu.transpose(1, 0, 2, 3),
                                    Cm.transpose(1, 0, 2)))
    y = ys.transpose(1, 0, 2)
    y = y + xc * p['D']
    y = y * _silu(res)
    x1 = x + y @ p['out_w']

    mu = jnp.mean(x1, axis=-1, keepdims=True)
    var = jnp.mean((x1 - mu) ** 2, axis=-1, keepdims=True)
    xn2 = (x1 - mu) * jax.lax.rsqrt(var + LN_EPS) * p['ln2_w'] + p['ln2_b']
    h1 = _gelu(xn2 @ p['w1'] + p['b1'])
    return x1 + h1 @ p['w2'] + p['b2']


if __name__ == "__main__":
    key = jax.random.PRNGKey(0)
    kx, kp = jax.random.split(key)
    x = jax.random.normal(kx, (BATCH, SEQ, D_MODEL), jnp.float32)
    params = init_params(kp)

    out = jax.block_until_ready(block_forward(x, params))
    ref = jax.block_until_ready(block_reference(x, params))

    assert out.shape == (BATCH, SEQ, D_MODEL)
    np.testing.assert_allclose(np.asarray(out), np.asarray(ref), rtol=2e-3, atol=2e-3)
    print("KERNEL_OK")
</pallas_src>

<mosaic_0001>
module attributes {stable_mosaic.version = 11 : i64} {
  func.func @_block_kernel(%arg0: memref<16x32xf32, #tpu.memory_space<vmem>>, %arg1: memref<32x128xf32, #tpu.memory_space<vmem>>, %arg2: memref<64x128xf32, #tpu.memory_space<vmem>>, %arg3: memref<96x64xf32, #tpu.memory_space<vmem>>, %arg4: memref<192x32xf32, #tpu.memory_space<vmem>>, %arg5: memref<48x16xf32, #tpu.memory_space<vmem>>, %arg6: memref<16x1024xf32, #tpu.memory_space<vmem>>, %arg7: memref<16x32xf32, #tpu.memory_space<vmem>>, %arg8: memref<8x16x128xf32, #tpu.memory_space<vmem>>, %arg9: memref<8x16x128xf32, #tpu.memory_space<vmem>>, %arg10: memref<32x1024xf32, #tpu.memory_space<vmem>>) attributes {dimension_semantics = [], scalar_prefetch = 0 : i64, scratch_operands = 3 : i64, tpu.core_type = #tpu.core_type<tc>} {
    %c0 = arith.constant 0 : index
    %c0_0 = arith.constant 0 : index
    %0 = vector.load %arg0[%c0, %c0_0] : memref<16x32xf32, #tpu.memory_space<vmem>>, vector<16x32xf32>
    %1 = arith.mulf %0, %0 : vector<16x32xf32>
    %cst = arith.constant dense<0.000000e+00> : vector<16xf32>
    %2 = vector.multi_reduction <add>, %1, %cst [1] : vector<16x32xf32> to vector<16xf32>
    %3 = vector.shape_cast %2 : vector<16xf32> to vector<16x1xf32>
    %cst_1 = arith.constant 3.200000e+01 : f32
    %4 = vector.broadcast %cst_1 : f32 to vector<16x1xf32>
    %5 = arith.divf %3, %4 : vector<16x1xf32>
    %cst_2 = arith.constant 9.99999974E-6 : f32
    %6 = vector.broadcast %cst_2 : f32 to vector<16x1xf32>
    %7 = arith.addf %5, %6 : vector<16x1xf32>
    %8 = math.rsqrt %7 : vector<16x1xf32>
    %9 = vector.broadcast %8 : vector<16x1xf32> to vector<16x32xf32>
    %10 = arith.mulf %0, %9 : vector<16x32xf32>
    %c0_3 = arith.constant 0 : index
    %c0_4 = arith.constant 0 : index
    %11 = vector.load %arg1[%c0_3, %c0_4] : memref<32x128xf32, #tpu.memory_space<vmem>>, vector<1x32xf32>
    %12 = vector.broadcast %11 : vector<1x32xf32> to vector<16x32xf32>
    %13 = arith.mulf %10, %12 : vector<16x32xf32>
    %c0_5 = arith.constant 0 : index
    %c0_6 = arith.constant 0 : index
    %14 = vector.load %arg2[%c0_5, %c0_6] : memref<64x128xf32, #tpu.memory_space<vmem>>, vector<32x128xf32>
    %cst_7 = arith.constant dense<0.000000e+00> : vector<16x128xf32>
    %15 = tpu.matmul %13, %14, %cst_7 {dimension_numbers = #tpu.dot_dimension_numbers<[1], [0], [0], [1], [0, 0, 1, 1], [], []>} : vector<16x32xf32>, vector<32x128xf32>, vector<16x128xf32> -> vector<16x128xf32>
    %16 = vector.extract_strided_slice %15 {offsets = [0, 0], sizes = [16, 64], strides = [1, 1]} : vector<16x128xf32> to vector<16x64xf32>
    %17 = vector.extract_strided_slice %15 {offsets = [0, 64], sizes = [16, 64], strides = [1, 1]} : vector<16x128xf32> to vector<16x64xf32>
    %c0_8 = arith.constant 0 : index
    %c0_9 = arith.constant 0 : index
    %18 = vector.load %arg5[%c0_8, %c0_9] : memref<48x16xf32, #tpu.memory_space<vmem>>, vector<48x16xf32>
    %cst_10 = arith.constant dense<0.000000e+00> : vector<48x64xf32>
    %19 = tpu.matmul %18, %16, %cst_10 {dimension_numbers = #tpu.dot_dimension_numbers<[1], [0], [0], [1], [0, 0, 1, 1], [], []>} : vector<48x16xf32>, vector<16x64xf32>, vector<48x64xf32> -> vector<48x64xf32>
    %c11 = arith.constant 11 : index
    %c0_11 = arith.constant 0 : index
    %20 = vector.load %arg1[%c11, %c0_11] : memref<32x128xf32, #tpu.memory_space<vmem>>, vector<1x64xf32>
    %21 = vector.broadcast %20 : vector<1x64xf32> to vector<16x64xf32>
    %22 = arith.mulf %16, %21 : vector<16x64xf32>
    %23 = vector.extract_strided_slice %19 {offsets = [0, 0], sizes = [16, 64], strides = [1, 1]} : vector<48x64xf32> to vector<16x64xf32>
    %c10 = arith.constant 10 : index
    %c0_12 = arith.constant 0 : index
    %24 = vector.load %arg1[%c10, %c0_12] : memref<32x128xf32, #tpu.memory_space<vmem>>, vector<1x64xf32>
    %25 = vector.broadcast %24 : vector<1x64xf32> to vector<16x64xf32>
    %26 = arith.mulf %23, %25 : vector<16x64xf32>
    %27 = arith.addf %22, %26 : vector<16x64xf32>
    %28 = vector.extract_strided_slice %19 {offsets = [16, 0], sizes = [16, 64], strides = [1, 1]} : vector<48x64xf32> to vector<16x64xf32>
    %c9 = arith.constant 9 : index
    %c0_13 = arith.constant 0 : index
    %29 = vector.load %arg1[%c9, %c0_13] : memref<32x128xf32, #tpu.memory_space<vmem>>, vector<1x64xf32>
    %30 = vector.broadcast %29 : vector<1x64xf32> to vector<16x64xf32>
    %31 = arith.mulf %28, %30 : vector<16x64xf32>
    %32 = arith.addf %27, %31 : vector<16x64xf32>
    %33 = vector.extract_strided_slice %19 {offsets = [32, 0], sizes = [16, 64], strides = [1, 1]} : vector<48x64xf32> to vector<16x64xf32>
    %c8 = arith.constant 8 : index
    %c0_14 = arith.constant 0 : index
    %34 = vector.load %arg1[%c8, %c0_14] : memref<32x128xf32, #tpu.memory_space<vmem>>, vector<1x64xf32>
    %35 = vector.broadcast %34 : vector<1x64xf32> to vector<16x64xf32>
    %36 = arith.mulf %33, %35 : vector<16x64xf32>
    %37 = arith.addf %32, %36 : vector<16x64xf32>
    %c1 = arith.constant 1 : index
    %c0_15 = arith.constant 0 : index
    %38 = vector.load %arg1[%c1, %c0_15] : memref<32x128xf32, #tpu.memory_space<vmem>>, vector<1x64xf32>
    %39 = vector.broadcast %38 : vector<1x64xf32> to vector<16x64xf32>
    %40 = arith.addf %37, %39 : vector<16x64xf32>
    %cst_16 = arith.constant 5.000000e-01 : f32
    %41 = vector.broadcast %cst_16 : f32 to vector<16x64xf32>
    %42 = arith.mulf %41, %40 : vector<16x64xf32>
    %43 = math.tanh %42 : vector<16x64xf32>
    %cst_17 = arith.constant 1.000000e+00 : f32
    %44 = vector.broadcast %cst_17 : f32 to vector<16x64xf32>
    %45 = arith.addf %43, %44 : vector<16x64xf32>
    %cst_18 = arith.constant 5.000000e-01 : f32
    %46 = vector.broadcast %cst_18 : f32 to vector<16x64xf32>
    %47 = arith.mulf %46, %45 : vector<16x64xf32>
    %48 = arith.mulf %40, %47 : vector<16x64xf32>
    %c64 = arith.constant 64 : index
    %c0_19 = arith.constant 0 : index
    %49 = vector.load %arg3[%c64, %c0_19] : memref<96x64xf32, #tpu.memory_space<vmem>>, vector<32x64xf32>
    %cst_20 = arith.constant dense<0.000000e+00> : vector<32x16xf32>
    %50 = tpu.matmul %49, %48, %cst_20 {dimension_numbers = #tpu.dot_dimension_numbers<[1], [1], [0], [0], [0, 0, 1, 0], [], []>} : vector<32x64xf32>, vector<16x64xf32>, vector<32x16xf32> -> vector<32x16xf32>
    %c0_21 = arith.constant 0 : index
    %c0_22 = arith.constant 0 : index
    %51 = vector.load %arg6[%c0_21, %c0_22] : memref<16x1024xf32, #tpu.memory_space<vmem>>, vector<16x1024xf32>
    %cst_23 = arith.constant dense<0.000000e+00> : vector<32x1024xf32>
    %52 = tpu.matmul %50, %51, %cst_23 {dimension_numbers = #tpu.dot_dimension_numbers<[1], [0], [0], [1], [0, 0, 1, 1], [], []>} : vector<32x16xf32>, vector<16x1024xf32>, vector<32x1024xf32> -> vector<32x1024xf32>
    %c0_24 = arith.constant 0 : index
    %c0_25 = arith.constant 0 : index
    %53 = vector.load %arg10[%c0_24, %c0_25] : memref<32x1024xf32, #tpu.memory_space<vmem>>, vector<32x1024xf32>
    tpu.vector_store %arg10[%c0_24, %c0_25], %52 {strides = array<i32>} : memref<32x1024xf32, #tpu.memory_space<vmem>>, vector<32x1024xf32>,
    %c0_26 = arith.constant 0 : index
    %c0_27 = arith.constant 0 : index
    %54 = vector.load %arg3[%c0_26, %c0_27] : memref<96x64xf32, #tpu.memory_space<vmem>>, vector<64x64xf32>
    %cst_28 = arith.constant dense<0.000000e+00> : vector<16x64xf32>
    %55 = tpu.matmul %48, %54, %cst_28 {dimension_numbers = #tpu.dot_dimension_numbers<[1], [0], [0], [1], [0, 0, 1, 1], [], []>} : vector<16x64xf32>, vector<64x64xf32>, vector<16x64xf32> -> vector<16x64xf32>
    %c2 = arith.constant 2 : index
    %c0_29 = arith.constant 0 : index
    %56 = vector.load %arg1[%c2, %c0_29] : memref<32x128xf32, #tpu.memory_space<vmem>>, vector<1x64xf32>
    %57 = vector.broadcast %56 : vector<1x64xf32> to vector<16x64xf32>
    %58 = arith.addf %55, %57 : vector<16x64xf32>
    %cst_30 = arith.constant 0.000000e+00 : f32
    %59 = vector.broadcast %cst_30 : f32 to vector<16x64xf32>
    %60 = arith.maximumf %58, %59 : vector<16x64xf32>
    %61 = math.absf %58 : vector<16x64xf32>
    %cst_31 = arith.constant 0.000000e+00 : f32
    %62 = vector.broadcast %cst_31 : f32 to vector<16x64xf32>
    %63 = arith.subf %62, %61 : vector<16x64xf32>
    %64 = math.exp %63 : vector<16x64xf32>
    %cst_32 = arith.constant 1.000000e+00 : f32
    %65 = vector.broadcast %cst_32 : f32 to vector<16x64xf32>
    %66 = arith.addf %65, %64 : vector<16x64xf32>
    %67 = math.log %66 : vector<16x64xf32>
    %68 = arith.addf %60, %67 : vector<16x64xf32>
    %69 = arith.mulf %68, %48 : vector<16x64xf32>
    %70 = vector.extract_strided_slice %68 {offsets = [0, 0], sizes = [8, 64], strides = [1, 1]} : vector<16x64xf32> to vector<8x64xf32>
    %71 = vector.extract_strided_slice %68 {offsets = [8, 0], sizes = [8, 64], strides = [1, 1]} : vector<16x64xf32> to vector<8x64xf32>
    %72 = tpu.concatenate %70, %71 in 1 : vector<8x64xf32>, vector<8x64xf32> -> vector<8x128xf32>
    %73 = vector.extract_strided_slice %69 {offsets = [0, 0], sizes = [8, 64], strides = [1, 1]} : vector<16x64xf32> to vector<8x64xf32>
    %74 = vector.extract_strided_slice %69 {offsets = [8, 0], sizes = [8, 64], strides = [1, 1]} : vector<16x64xf32> to vector<8x64xf32>
    %75 = tpu.concatenate %73, %74 in 1 : vector<8x64xf32>, vector<8x64xf32> -> vector<8x128xf32>
    %c16 = arith.constant 16 : index
    %c0_33 = arith.constant 0 : index
    %76 = vector.load %arg1[%c16, %c0_33] : memref<32x128xf32, #tpu.memory_space<vmem>>, vector<16x128xf32>
    %77 = vector.extract_strided_slice %75 {offsets = [0, 0], sizes = [1, 128], strides = [1, 1]} : vector<8x128xf32> to vector<1x128xf32>
    %c0_34 = arith.constant 0 : index
    %c0_35 = arith.constant 0 : index
    %78 = vector.load %arg10[%c0_34, %c0_35] : memref<32x1024xf32, #tpu.memory_space<vmem>>, vector<16x128xf32>
    %79 = vector.broadcast %77 : vector<1x128xf32> to vector<16x128xf32>
    %80 = arith.mulf %79, %78 : vector<16x128xf32>
    %c0_36 = arith.constant 0 : index
    %c0_37 = arith.constant 0 : index
    %c0_38 = arith.constant 0 : index
    %81 = vector.load %arg9[%c0_36, %c0_37, %c0_38] : memref<8x16x128xf32, #tpu.memory_space<vmem>>, vector<1x16x128xf32>
    %82 = vector.shape_cast %81 : vector<1x16x128xf32> to vector<16x128xf32>
    %83 = vector.shape_cast %80 : vector<16x128xf32> to vector<1x16x128xf32>
    tpu.vector_store %arg9[%c0_36, %c0_37, %c0_38], %83 {strides = array<i32>} : memref<8x16x128xf32, #tpu.memory_space<vmem>>, vector<1x16x128xf32>,
    %84 = vector.extract_strided_slice %72 {offsets = [1, 0], sizes = [1, 128], strides = [1, 1]} : vector<8x128xf32> to vector<1x128xf32>
    %85 = vector.broadcast %84 : vector<1x128xf32> to vector<16x128xf32>
    %86 = arith.mulf %85, %76 : vector<16x128xf32>
    %87 = math.exp %86 : vector<16x128xf32>
    %c1_39 = arith.constant 1 : index
    %c0_40 = arith.constant 0 : index
    %c0_41 = arith.constant 0 : index
    %88 = vector.load %arg8[%c1_39, %c0_40, %c0_41] : memref<8x16x128xf32, #tpu.memory_space<vmem>>, vector<1x16x128xf32>
    %89 = vector.shape_cast %88 : vector<1x16x128xf32> to vector<16x128xf32>
    %90 = vector.shape_cast %87 : vector<16x128xf32> to vector<1x16x128xf32>
    tpu.vector_store %arg8[%c1_39, %c0_40, %c0_41], %90 {strides = array<i32>} : memref<8x16x128xf32, #tpu.memory_space<vmem>>, vector<1x16x128xf32>,
    %91 = vector.extract_strided_slice %75 {offsets = [1, 0], sizes = [1, 128], strides = [1, 1]} : vector<8x128xf32> to vector<1x128xf32>
    %c0_42 = arith.constant 0 : index
    %c128 = arith.constant 128 : index
    %92 = vector.load %arg10[%c0_42, %c128] : memref<32x1024xf32, #tpu.memory_space<vmem>>, vector<16x128xf32>
    %93 = vector.broadcast %91 : vector<1x128xf32> to vector<16x128xf32>
    %94 = arith.mulf %93, %92 : vector<16x128xf32>
    %c1_43 = arith.constant 1 : index
    %c0_44 = arith.constant 0 : index
    %c0_45 = arith.constant 0 : index
    %95 = vector.load %arg9[%c1_43, %c0_44, %c0_45] : memref<8x16x128xf32, #tpu.memory_space<vmem>>, vector<1x16x128xf32>
    %96 = vector.shape_cast %95 : vector<1x16x128xf32> to vector<16x128xf32>
    %97 = vector.shape_cast %94 : vector<16x128xf32> to vector<1x16x128xf32>
    tpu.vector_store %arg9[%c1_43, %c0_44, %c0_45], %97 {strides = array<i32>} : memref<8x16x128xf32, #tpu.memory_space<vmem>>, vector<1x16x128xf32>,
    %98 = vector.extract_strided_slice %72 {offsets = [2, 0], sizes = [1, 128], strides = [1, 1]} : vector<8x128xf32> to vector<1x128xf32>
    %99 = vector.broadcast %98 : vector<1x128xf32> to vector<16x128xf32>
    %100 = arith.mulf %99, %76 : vector<16x128xf32>
    %101 = math.exp %100 : vector<16x128xf32>
    %c2_46 = arith.constant 2 : index
    %c0_47 = arith.constant 0 : index
    %c0_48 = arith.constant 0 : index
    %102 = vector.load %arg8[%c2_46, %c0_47, %c0_48] : memref<8x16x128xf32, #tpu.memory_space<vmem>>, vector<1x16x128xf32>
    %103 = vector.shape_cast %102 : vector<1x16x128xf32> to vector<16x128xf32>
    %104 = vector.shape_cast %101 : vector<16x128xf32> to vector<1x16x128xf32>
    tpu.vector_store %arg8[%c2_46, %c0_47, %c0_48], %104 {strides = array<i32>} : memref<8x16x128xf32, #tpu.memory_space<vmem>>, vector<1x16x128xf32>,
    %105 = vector.extract_strided_slice %75 {offsets = [2, 0], sizes = [1, 128], strides = [1, 1]} : vector<8x128xf32> to vector<1x128xf32>
    %c0_49 = arith.constant 0 : index
    %c256 = arith.constant 256 : index
    %106 = vector.load %arg10[%c0_49, %c256] : memref<32x1024xf32, #tpu.memory_space<vmem>>, vector<16x128xf32>
    %107 = vector.broadcast %105 : vector<1x128xf32> to vector<16x128xf32>
    %108 = arith.mulf %107, %106 : vector<16x128xf32>
    %c2_50 = arith.constant 2 : index
    %c0_51 = arith.constant 0 : index
    %c0_52 = arith.constant 0 : index
    %109 = vector.load %arg9[%c2_50, %c0_51, %c0_52] : memref<8x16x128xf32, #tpu.memory_space<vmem>>, vector<1x16x128xf32>
    %110 = vector.shape_cast %109 : vector<1x16x128xf32> to vector<16x128xf32>
    %111 = vector.shape_cast %108 : vector<16x128xf32> to vector<1x16x128xf32>
    tpu.vector_store %arg9[%c2_50, %c0_51, %c0_52], %111 {strides = array<i32>} : memref<8x16x128xf32, #tpu.memory_space<vmem>>, vector<1x16x128xf32>,
    %112 = vector.extract_strided_slice %72 {offsets = [3, 0], sizes = [1, 128], strides = [1, 1]} : vector<8x128xf32> to vector<1x128xf32>
    %113 = vector.broadcast %112 : vector<1x128xf32> to vector<16x128xf32>
    %114 = arith.mulf %113, %76 : vector<16x128xf32>
    %115 = math.exp %114 : vector<16x128xf32>
    %c3 = arith.constant 3 : index
    %c0_53 = arith.constant 0 : index
    %c0_54 = arith.constant 0 : index
    %116 = vector.load %arg8[%c3, %c0_53, %c0_54] : memref<8x16x128xf32, #tpu.memory_space<vmem>>, vector<1x16x128xf32>
    %117 = vector.shape_cast %116 : vector<1x16x128xf32> to vector<16x128xf32>
    %118 = vector.shape_cast %115 : vector<16x128xf32> to vector<1x16x128xf32>
    tpu.vector_store %arg8[%c3, %c0_53, %c0_54], %118 {strides = array<i32>} : memref<8x16x128xf32, #tpu.memory_space<vmem>>, vector<1x16x128xf32>,
    %119 = vector.extract_strided_slice %75 {offsets = [3, 0], sizes = [1, 128], strides = [1, 1]} : vector<8x128xf32> to vector<1x128xf32>
    %c0_55 = arith.constant 0 : index
    %c384 = arith.constant 384 : index
    %120 = vector.load %arg10[%c0_55, %c384] : memref<32x1024xf32, #tpu.memory_space<vmem>>, vector<16x128xf32>
    %121 = vector.broadcast %119 : vector<1x128xf32> to vector<16x128xf32>
    %122 = arith.mulf %121, %120 : vector<16x128xf32>
    %c3_56 = arith.constant 3 : index
    %c0_57 = arith.constant 0 : index
    %c0_58 = arith.constant 0 : index
    %123 = vector.load %arg9[%c3_56, %c0_57, %c0_58] : memref<8x16x128xf32, #tpu.memory_space<vmem>>, vector<1x16x128xf32>
    %124 = vector.shape_cast %123 : vector<1x16x128xf32> to vector<16x128xf32>
    %125 = vector.shape_cast %122 : vector<16x128xf32> to vector<1x16x128xf32>
    tpu.vector_store %arg9[%c3_56, %c0_57, %c0_58], %125 {strides = array<i32>} : memref<8x16x128xf32, #tpu.memory_space<vmem>>, vector<1x16x128xf32>,
    %126 = vector.extract_strided_slice %72 {offsets = [4, 0], sizes = [1, 128], strides = [1, 1]} : vector<8x128xf32> to vector<1x128xf32>
    %127 = vector.broadcast %126 : vector<1x128xf32> to vector<16x128xf32>
    %128 = arith.mulf %127, %76 : vector<16x128xf32>
    %129 = math.exp %128 : vector<16x128xf32>
    %c4 = arith.constant 4 : index
    %c0_59 = arith.constant 0 : index
    %c0_60 = arith.constant 0 : index
    %130 = vector.load %arg8[%c4, %c0_59, %c0_60] : memref<8x16x128xf32, #tpu.memory_space<vmem>>, vector<1x16x128xf32>
    %131 = vector.shape_cast %130 : vector<1x16x128xf32> to vector<16x128xf32>
    %132 = vector.shape_cast %129 : vector<16x128xf32> to vector<1x16x128xf32>
    tpu.vector_store %arg8[%c4, %c0_59, %c0_60], %132 {strides = array<i32>} : memref<8x16x128xf32, #tpu.memory_space<vmem>>, vector<1x16x128xf32>,
    %133 = vector.extract_strided_slice %75 {offsets = [4, 0], sizes = [1, 128], strides = [1, 1]} : vector<8x128xf32> to vector<1x128xf32>
    %c0_61 = arith.constant 0 : index
    %c512 = arith.constant 512 : index
    %134 = vector.load %arg10[%c0_61, %c512] : memref<32x1024xf32, #tpu.memory_space<vmem>>, vector<16x128xf32>
    %135 = vector.broadcast %133 : vector<1x128xf32> to vector<16x128xf32>
    %136 = arith.mulf %135, %134 : vector<16x128xf32>
    %c4_62 = arith.constant 4 : index
    %c0_63 = arith.constant 0 : index
    %c0_64 = arith.constant 0 : index
    %137 = vector.load %arg9[%c4_62, %c0_63, %c0_64] : memref<8x16x128xf32, #tpu.memory_space<vmem>>, vector<1x16x128xf32>
    %138 = vector.shape_cast %137 : vector<1x16x128xf32> to vector<16x128xf32>
    %139 = vector.shape_cast %136 : vector<16x128xf32> to vector<1x16x128xf32>
    tpu.vector_store %arg9[%c4_62, %c0_63, %c0_64], %139 {strides = array<i32>} : memref<8x16x128xf32, #tpu.memory_space<vmem>>, vector<1x16x128xf32>,
    %140 = vector.extract_strided_slice %72 {offsets = [5, 0], sizes = [1, 128], strides = [1, 1]} : vector<8x128xf32> to vector<1x128xf32>
    %141 = vector.broadcast %140 : vector<1x128xf32> to vector<16x128xf32>
    %142 = arith.mulf %141, %76 : vector<16x128xf32>
    %143 = math.exp %142 : vector<16x128xf32>
    %c5 = arith.constant 5 : index
    %c0_65 = arith.constant 0 : index
    %c0_66 = arith.constant 0 : index
    %144 = vector.load %arg8[%c5, %c0_65, %c0_66] : memref<8x16x128xf32, #tpu.memory_space<vmem>>, vector<1x16x128xf32>
    %145 = vector.shape_cast %144 : vector<1x16x128xf32> to vector<16x128xf32>
    %146 = vector.shape_cast %143 : vector<16x128xf32> to vector<1x16x128xf32>
    tpu.vector_store %arg8[%c5, %c0_65, %c0_66], %146 {strides = array<i32>} : memref<8x16x128xf32, #tpu.memory_space<vmem>>, vector<1x16x128xf32>,
    %147 = vector.extract_strided_slice %75 {offsets = [5, 0], sizes = [1, 128], strides = [1, 1]} : vector<8x128xf32> to vector<1x128xf32>
    %c0_67 = arith.constant 0 : index
    %c640 = arith.constant 640 : index
    %148 = vector.load %arg10[%c0_67, %c640] : memref<32x1024xf32, #tpu.memory_space<vmem>>, vector<16x128xf32>
    %149 = vector.broadcast %147 : vector<1x128xf32> to vector<16x128xf32>
    %150 = arith.mulf %149, %148 : vector<16x128xf32>
    %c5_68 = arith.constant 5 : index
    %c0_69 = arith.constant 0 : index
    %c0_70 = arith.constant 0 : index
    %151 = vector.load %arg9[%c5_68, %c0_69, %c0_70] : memref<8x16x128xf32, #tpu.memory_space<vmem>>, vector<1x16x128xf32>
    %152 = vector.shape_cast %151 : vector<1x16x128xf32> to vector<16x128xf32>
    %153 = vector.shape_cast %150 : vector<16x128xf32> to vector<1x16x128xf32>
    tpu.vector_store %arg9[%c5_68, %c0_69, %c0_70], %153 {strides = array<i32>} : memref<8x16x128xf32, #tpu.memory_space<vmem>>, vector<1x16x128xf32>,
    %154 = vector.extract_strided_slice %72 {offsets = [6, 0], sizes = [1, 128], strides = [1, 1]} : vector<8x128xf32> to vector<1x128xf32>
    %155 = vector.broadcast %154 : vector<1x128xf32> to vector<16x128xf32>
    %156 = arith.mulf %155, %76 : vector<16x128xf32>
    %157 = math.exp %156 : vector<16x128xf32>
    %c6 = arith.constant 6 : index
    %c0_71 = arith.constant 0 : index
    %c0_72 = arith.constant 0 : index
    %158 = vector.load %arg8[%c6, %c0_71, %c0_72] : memref<8x16x128xf32, #tpu.memory_space<vmem>>, vector<1x16x128xf32>
    %159 = vector.shape_cast %158 : vector<1x16x128xf32> to vector<16x128xf32>
    %160 = vector.shape_cast %157 : vector<16x128xf32> to vector<1x16x128xf32>
    tpu.vector_store %arg8[%c6, %c0_71, %c0_72], %160 {strides = array<i32>} : memref<8x16x128xf32, #tpu.memory_space<vmem>>, vector<1x16x128xf32>,
    %161 = vector.extract_strided_slice %75 {offsets = [6, 0], sizes = [1, 128], strides = [1, 1]} : vector<8x128xf32> to vector<1x128xf32>
    %c0_73 = arith.constant 0 : index
    %c768 = arith.constant 768 : index
    %162 = vector.load %arg10[%c0_73, %c768] : memref<32x1024xf32, #tpu.memory_space<vmem>>, vector<16x128xf32>
    %163 = vector.broadcast %161 : vector<1x128xf32> to vector<16x128xf32>
    %164 = arith.mulf %163, %162 : vector<16x128xf32>
    %c6_74 = arith.constant 6 : index
    %c0_75 = arith.constant 0 : index
    %c0_76 = arith.constant 0 : index
    %165 = vector.load %arg9[%c6_74, %c0_75, %c0_76] : memref<8x16x128xf32, #tpu.memory_space<vmem>>, vector<1x16x128xf32>
    %166 = vector.shape_cast %165 : vector<1x16x128xf32> to vector<16x128xf32>
    %167 = vector.shape_cast %164 : vector<16x128xf32> to vector<1x16x128xf32>
    tpu.vector_store %arg9[%c6_74, %c0_75, %c0_76], %167 {strides = array<i32>} : memref<8x16x128xf32, #tpu.memory_space<vmem>>, vector<1x16x128xf32>,
    %168 = vector.extract_strided_slice %72 {offsets = [7, 0], sizes = [1, 128], strides = [1, 1]} : vector<8x128xf32> to vector<1x128xf32>
    %169 = vector.broadcast %168 : vector<1x128xf32> to vector<16x128xf32>
    %170 = arith.mulf %169, %76 : vector<16x128xf32>
    %171 = math.exp %170 : vector<16x128xf32>
    %c7 = arith.constant 7 : index
    %c0_77 = arith.constant 0 : index
    %c0_78 = arith.constant 0 : index
    %172 = vector.load %arg8[%c7, %c0_77, %c0_78] : memref<8x16x128xf32, #tpu.memory_space<vmem>>, vector<1x16x128xf32>
    %173 = vector.shape_cast %172 : vector<1x16x128xf32> to vector<16x128xf32>
    %174 = vector.shape_cast %171 : vector<16x128xf32> to vector<1x16x128xf32>
    tpu.vector_store %arg8[%c7, %c0_77, %c0_78], %174 {strides = array<i32>} : memref<8x16x128xf32, #tpu.memory_space<vmem>>, vector<1x16x128xf32>,
    %175 = vector.extract_strided_slice %75 {offsets = [7, 0], sizes = [1, 128], strides = [1, 1]} : vector<8x128xf32> to vector<1x128xf32>
    %c0_79 = arith.constant 0 : index
    %c896 = arith.constant 896 : index
    %176 = vector.load %arg10[%c0_79, %c896] : memref<32x1024xf32, #tpu.memory_space<vmem>>, vector<16x128xf32>
    %177 = vector.broadcast %175 : vector<1x128xf32> to vector<16x128xf32>
    %178 = arith.mulf %177, %176 : vector<16x128xf32>
    %c7_80 = arith.constant 7 : index
    %c0_81 = arith.constant 0 : index
    %c0_82 = arith.constant 0 : index
    %179 = vector.load %arg9[%c7_80, %c0_81, %c0_82] : memref<8x16x128xf32, #tpu.memory_space<vmem>>, vector<1x16x128xf32>
    %180 = vector.shape_cast %179 : vector<1x16x128xf32> to vector<16x128xf32>
    %181 = vector.shape_cast %178 : vector<16x128xf32> to vector<1x16x128xf32>
    tpu.vector_store %arg9[%c7_80, %c0_81, %c0_82], %181 {strides = array<i32>} : memref<8x16x128xf32, #tpu.memory_space<vmem>>, vector<1x16x128xf32>,
    %c0_83 = arith.constant 0 : index
    %c0_84 = arith.constant 0 : index
    %c0_85 = arith.constant 0 : index
    %182 = vector.load %arg9[%c0_83, %c0_84, %c0_85] : memref<8x16x128xf32, #tpu.memory_space<vmem>>, vector<1x16x128xf32>
    %183 = vector.shape_cast %182 : vector<1x16x128xf32> to vector<16x128xf32>
    %c16_86 = arith.constant 16 : index
    %c0_87 = arith.constant 0 : index
    %184 = vector.load %arg10[%c16_86, %c0_87] : memref<32x1024xf32, #tpu.memory_space<vmem>>, vector<16x128xf32>
    %185 = arith.mulf %183, %184 : vector<16x128xf32>
    %cst_88 = arith.constant dense<0.000000e+00> : vector<128xf32>
    %186 = vector.multi_reduction <add>, %185, %cst_88 [0] : vector<16x128xf32> to vector<128xf32>
    %187 = vector.shape_cast %186 : vector<128xf32> to vector<1x128xf32>
    %c1_89 = arith.constant 1 : index
    %c0_90 = arith.constant 0 : index
    %c0_91 = arith.constant 0 : index
    %188 = vector.load %arg8[%c1_89, %c0_90, %c0_91] : memref<8x16x128xf32, #tpu.memory_space<vmem>>, vector<1x16x128xf32>
    %189 = vector.shape_cast %188 : vector<1x16x128xf32> to vector<16x128xf32>
    %190 = arith.mulf %189, %183 : vector<16x128xf32>
    %c1_92 = arith.constant 1 : index
    %c0_93 = arith.constant 0 : index
    %c0_94 = arith.constant 0 : index
    %191 = vector.load %arg9[%c1_92, %c0_93, %c0_94] : memref<8x16x128xf32, #tpu.memory_space<vmem>>, vector<1x16x128xf32>
    %192 = vector.shape_cast %191 : vector<1x16x128xf32> to vector<16x128xf32>
    %193 = arith.addf %190, %192 : vector<16x128xf32>
    %c16_95 = arith.constant 16 : index
    %c128_96 = arith.constant 128 : index
    %194 = vector.load %arg10[%c16_95, %c128_96] : memref<32x1024xf32, #tpu.memory_space<vmem>>, vector<16x128xf32>
    %195 = arith.mulf %193, %194 : vector<16x128xf32>
    %cst_97 = arith.constant dense<0.000000e+00> : vector<128xf32>
    %196 = vector.multi_reduction <add>, %195, %cst_97 [0] : vector<16x128xf32> to vector<128xf32>
    %197 = vector.shape_cast %196 : vector<128xf32> to vector<1x128xf32>
    %c2_98 = arith.constant 2 : index
    %c0_99 = arith.constant 0 : index
    %c0_100 = arith.constant 0 : index
    %198 = vector.load %arg8[%c2_98, %c0_99, %c0_100] : memref<8x16x128xf32, #tpu.memory_space<vmem>>, vector<1x16x128xf32>
    %199 = vector.shape_cast %198 : vector<1x16x128xf32> to vector<16x128xf32>
    %200 = arith.mulf %199, %193 : vector<16x128xf32>
    %c2_101 = arith.constant 2 : index
    %c0_102 = arith.constant 0 : index
    %c0_103 = arith.constant 0 : index
    %201 = vector.load %arg9[%c2_101, %c0_102, %c0_103] : memref<8x16x128xf32, #tpu.memory_space<vmem>>, vector<1x16x128xf32>
    %202 = vector.shape_cast %201 : vector<1x16x128xf32> to vector<16x128xf32>
    %203 = arith.addf %200, %202 : vector<16x128xf32>
    %c16_104 = arith.constant 16 : index
    %c256_105 = arith.constant 256 : index
    %204 = vector.load %arg10[%c16_104, %c256_105] : memref<32x1024xf32, #tpu.memory_space<vmem>>, vector<16x128xf32>
    %205 = arith.mulf %203, %204 : vector<16x128xf32>
    %cst_106 = arith.constant dense<0.000000e+00> : vector<128xf32>
    %206 = vector.multi_reduction <add>, %205, %cst_106 [0] : vector<16x128xf32> to vector<128xf32>
    %207 = vector.shape_cast %206 : vector<128xf32> to vector<1x128xf32>
    %c3_107 = arith.constant 3 : index
    %c0_108 = arith.constant 0 : index
    %c0_109 = arith.constant 0 : index
    %208 = vector.load %arg8[%c3_107, %c0_108, %c0_109] : memref<8x16x128xf32, #tpu.memory_space<vmem>>, vector<1x16x128xf32>
    %209 = vector.shape_cast %208 : vector<1x16x128xf32> to vector<16x128xf32>
    %210 = arith.mulf %209, %203 : vector<16x128xf32>
    %c3_110 = arith.constant 3 : index
    %c0_111 = arith.constant 0 : index
    %c0_112 = arith.constant 0 : index
    %211 = vector.load %arg9[%c3_110, %c0_111, %c0_112] : memref<8x16x128xf32, #tpu.memory_space<vmem>>, vector<1x16x128xf32>
    %212 = vector.shape_cast %211 : vector<1x16x128xf32> to vector<16x128xf32>
    %213 = arith.addf %210, %212 : vector<16x128xf32>
    %c16_113 = arith.constant 16 : index
    %c384_114 = arith.constant 384 : index
    %214 = vector.load %arg10[%c16_113, %c384_114] : memref<32x1024xf32, #tpu.memory_space<vmem>>, vector<16x128xf32>
    %215 = arith.mulf %213, %214 : vector<16x128xf32>
    %cst_115 = arith.constant dense<0.000000e+00> : vector<128xf32>
    %216 = vector.multi_reduction <add>, %215, %cst_115 [0] : vector<16x128xf32> to vector<128xf32>
    %217 = vector.shape_cast %216 : vector<128xf32> to vector<1x128xf32>
    %c4_116 = arith.constant 4 : index
    %c0_117 = arith.constant 0 : index
    %c0_118 = arith.constant 0 : index
    %218 = vector.load %arg8[%c4_116, %c0_117, %c0_118] : memref<8x16x128xf32, #tpu.memory_space<vmem>>, vector<1x16x128xf32>
    %219 = vector.shape_cast %218 : vector<1x16x128xf32> to vector<16x128xf32>
    %220 = arith.mulf %219, %213 : vector<16x128xf32>
    %c4_119 = arith.constant 4 : index
    %c0_120 = arith.constant 0 : index
    %c0_121 = arith.constant 0 : index
    %221 = vector.load %arg9[%c4_119, %c0_120, %c0_121] : memref<8x16x128xf32, #tpu.memory_space<vmem>>, vector<1x16x128xf32>
    %222 = vector.shape_cast %221 : vector<1x16x128xf32> to vector<16x128xf32>
    %223 = arith.addf %220, %222 : vector<16x128xf32>
    %c16_122 = arith.constant 16 : index
    %c512_123 = arith.constant 512 : index
    %224 = vector.load %arg10[%c16_122, %c512_123] : memref<32x1024xf32, #tpu.memory_space<vmem>>, vector<16x128xf32>
    %225 = arith.mulf %223, %224 : vector<16x128xf32>
    %cst_124 = arith.constant dense<0.000000e+00> : vector<128xf32>
    %226 = vector.multi_reduction <add>, %225, %cst_124 [0] : vector<16x128xf32> to vector<128xf32>
    %227 = vector.shape_cast %226 : vector<128xf32> to vector<1x128xf32>
    %c5_125 = arith.constant 5 : index
    %c0_126 = arith.constant 0 : index
    %c0_127 = arith.constant 0 : index
    %228 = vector.load %arg8[%c5_125, %c0_126, %c0_127] : memref<8x16x128xf32, #tpu.memory_space<vmem>>, vector<1x16x128xf32>
    %229 = vector.shape_cast %228 : vector<1x16x128xf32> to vector<16x128xf32>
    %230 = arith.mulf %229, %223 : vector<16x128xf32>
    %c5_128 = arith.constant 5 : index
    %c0_129 = arith.constant 0 : index
    %c0_130 = arith.constant 0 : index
    %231 = vector.load %arg9[%c5_128, %c0_129, %c0_130] : memref<8x16x128xf32, #tpu.memory_space<vmem>>, vector<1x16x128xf32>
    %232 = vector.shape_cast %231 : vector<1x16x128xf32> to vector<16x128xf32>
    %233 = arith.addf %230, %232 : vector<16x128xf32>
    %c16_131 = arith.constant 16 : index
    %c640_132 = arith.constant 640 : index
    %234 = vector.load %arg10[%c16_131, %c640_132] : memref<32x1024xf32, #tpu.memory_space<vmem>>, vector<16x128xf32>
    %235 = arith.mulf %233, %234 : vector<16x128xf32>
    %cst_133 = arith.constant dense<0.000000e+00> : vector<128xf32>
    %236 = vector.multi_reduction <add>, %235, %cst_133 [0] : vector<16x128xf32> to vector<128xf32>
    %237 = vector.shape_cast %236 : vector<128xf32> to vector<1x128xf32>
    %c6_134 = arith.constant 6 : index
    %c0_135 = arith.constant 0 : index
    %c0_136 = arith.constant 0 : index
    %238 = vector.load %arg8[%c6_134, %c0_135, %c0_136] : memref<8x16x128xf32, #tpu.memory_space<vmem>>, vector<1x16x128xf32>
    %239 = vector.shape_cast %238 : vector<1x16x128xf32> to vector<16x128xf32>
    %240 = arith.mulf %239, %233 : vector<16x128xf32>
    %c6_137 = arith.constant 6 : index
    %c0_138 = arith.constant 0 : index
    %c0_139 = arith.constant 0 : index
    %241 = vector.load %arg9[%c6_137, %c0_138, %c0_139] : memref<8x16x128xf32, #tpu.memory_space<vmem>>, vector<1x16x128xf32>
    %242 = vector.shape_cast %241 : vector<1x16x128xf32> to vector<16x128xf32>
    %243 = arith.addf %240, %242 : vector<16x128xf32>
    %c16_140 = arith.constant 16 : index
    %c768_141 = arith.constant 768 : index
    %244 = vector.load %arg10[%c16_140, %c768_141] : memref<32x1024xf32, #tpu.memory_space<vmem>>, vector<16x128xf32>
    %245 = arith.mulf %243, %244 : vector<16x128xf32>
    %cst_142 = arith.constant dense<0.000000e+00> : vector<128xf32>
    %246 = vector.multi_reduction <add>, %245, %cst_142 [0] : vector<16x128xf32> to vector<128xf32>
    %247 = vector.shape_cast %246 : vector<128xf32> to vector<1x128xf32>
    %c7_143 = arith.constant 7 : index
    %c0_144 = arith.constant 0 : index
    %c0_145 = arith.constant 0 : index
    %248 = vector.load %arg8[%c7_143, %c0_144, %c0_145] : memref<8x16x128xf32, #tpu.memory_space<vmem>>, vector<1x16x128xf32>
    %249 = vector.shape_cast %248 : vector<1x16x128xf32> to vector<16x128xf32>
    %250 = arith.mulf %249, %243 : vector<16x128xf32>
    %c7_146 = arith.constant 7 : index
    %c0_147 = arith.constant 0 : index
    %c0_148 = arith.constant 0 : index
    %251 = vector.load %arg9[%c7_146, %c0_147, %c0_148] : memref<8x16x128xf32, #tpu.memory_space<vmem>>, vector<1x16x128xf32>
    %252 = vector.shape_cast %251 : vector<1x16x128xf32> to vector<16x128xf32>
    %253 = arith.addf %250, %252 : vector<16x128xf32>
    %c16_149 = arith.constant 16 : index
    %c896_150 = arith.constant 896 : index
    %254 = vector.load %arg10[%c16_149, %c896_150] : memref<32x1024xf32, #tpu.memory_space<vmem>>, vector<16x128xf32>
    %255 = arith.mulf %253, %254 : vector<16x128xf32>
    %cst_151 = arith.constant dense<0.000000e+00> : vector<128xf32>
    %256 = vector.multi_reduction <add>, %255, %cst_151 [0] : vector<16x128xf32> to vector<128xf32>
    %257 = vector.shape_cast %256 : vector<128xf32> to vector<1x128xf32>
    %258 = tpu.concatenate %187, %197, %207, %217, %227, %237, %247, %257 in 0 : vector<1x128xf32>, vector<1x128xf32>, vector<1x128xf32>, vector<1x128xf32>, vector<1x128xf32>, vector<1x128xf32>, vector<1x128xf32>, vector<1x128xf32> -> vector<8x128xf32>
    %259 = vector.extract_strided_slice %258 {offsets = [0, 0], sizes = [8, 64], strides = [1, 1]} : vector<8x128xf32> to vector<8x64xf32>
    %260 = vector.extract_strided_slice %258 {offsets = [0, 64], sizes = [8, 64], strides = [1, 1]} : vector<8x128xf32> to vector<8x64xf32>
    %261 = tpu.concatenate %259, %260 in 0 : vector<8x64xf32>, vector<8x64xf32> -> vector<16x64xf32>
    %c3_152 = arith.constant 3 : index
    %c0_153 = arith.constant 0 : index
    %262 = vector.load %arg1[%c3_152, %c0_153] : memref<32x128xf32, #tpu.memory_space<vmem>>, vector<1x64xf32>
    %263 = vector.broadcast %262 : vector<1x64xf32> to vector<16x64xf32>
    %264 = arith.mulf %48, %263 : vector<16x64xf32>
    %265 = arith.addf %261, %264 : vector<16x64xf32>
    %cst_154 = arith.constant 5.000000e-01 : f32
    %266 = vector.broadcast %cst_154 : f32 to vector<16x64xf32>
    %267 = arith.mulf %266, %17 : vector<16x64xf32>
    %268 = math.tanh %267 : vector<16x64xf32>
    %cst_155 = arith.constant 1.000000e+00 : f32
    %269 = vector.broadcast %cst_155 : f32 to vector<16x64xf32>
    %270 = arith.addf %268, %269 : vector<16x64xf32>
    %cst_156 = arith.constant 5.000000e-01 : f32
    %271 = vector.broadcast %cst_156 : f32 to vector<16x64xf32>
    %272 = arith.mulf %271, %270 : vector<16x64xf32>
    %273 = arith.mulf %17, %272 : vector<16x64xf32>
    %274 = arith.mulf %265, %273 : vector<16x64xf32>
    %c0_157 = arith.constant 0 : index
    %c0_158 = arith.constant 0 : index
    %275 = vector.load %arg4[%c0_157, %c0_158] : memref<192x32xf32, #tpu.memory_space<vmem>>, vector<64x32xf32>
    %cst_159 = arith.constant dense<0.000000e+00> : vector<16x32xf32>
    %276 = tpu.matmul %274, %275, %cst_159 {dimension_numbers = #tpu.dot_dimension_numbers<[1], [0], [0], [1], [0, 0, 1, 1], [], []>} : vector<16x64xf32>, vector<64x32xf32>, vector<16x32xf32> -> vector<16x32xf32>
    %277 = arith.addf %0, %276 : vector<16x32xf32>
    %cst_160 = arith.constant dense<0.000000e+00> : vector<16xf32>
    %278 = vector.multi_reduction <add>, %277, %cst_160 [1] : vector<16x32xf32> to vector<16xf32>
    %279 = vector.shape_cast %278 : vector<16xf32> to vector<16x1xf32>
    %cst_161 = arith.constant 3.200000e+01 : f32
    %280 = vector.broadcast %cst_161 : f32 to vector<16x1xf32>
    %281 = arith.divf %279, %280 : vector<16x1xf32>
    %282 = vector.broadcast %281 : vector<16x1xf32> to vector<16x32xf32>
    %283 = arith.subf %277, %282 : vector<16x32xf32>
    %284 = vector.broadcast %281 : vector<16x1xf32> to vector<16x32xf32>
    %285 = arith.subf %277, %284 : vector<16x32xf32>
    %286 = arith.mulf %283, %285 : vector<16x32xf32>
    %cst_162 = arith.constant dense<0.000000e+00> : vector<16xf32>
    %287 = vector.multi_reduction <add>, %286, %cst_162 [1] : vector<16x32xf32> to vector<16xf32>
    %288 = vector.shape_cast %287 : vector<16xf32> to vector<16x1xf32>
    %cst_163 = arith.constant 3.200000e+01 : f32
    %289 = vector.broadcast %cst_163 : f32 to vector<16x1xf32>
    %290 = arith.divf %288, %289 : vector<16x1xf32>
    %291 = vector.broadcast %281 : vector<16x1xf32> to vector<16x32xf32>
    %292 = arith.subf %277, %291 : vector<16x32xf32>
    %cst_164 = arith.constant 9.99999974E-6 : f32
    %293 = vector.broadcast %cst_164 : f32 to vector<16x1xf32>
    %294 = arith.addf %290, %293 : vector<16x1xf32>
    %295 = math.rsqrt %294 : vector<16x1xf32>
    %296 = vector.broadcast %295 : vector<16x1xf32> to vector<16x32xf32>
    %297 = arith.mulf %292, %296 : vector<16x32xf32>
    %c4_165 = arith.constant 4 : index
    %c0_166 = arith.constant 0 : index
    %298 = vector.load %arg1[%c4_165, %c0_166] : memref<32x128xf32, #tpu.memory_space<vmem>>, vector<1x32xf32>
    %299 = vector.broadcast %298 : vector<1x32xf32> to vector<16x32xf32>
    %300 = arith.mulf %297, %299 : vector<16x32xf32>
    %c5_167 = arith.constant 5 : index
    %c0_168 = arith.constant 0 : index
    %301 = vector.load %arg1[%c5_167, %c0_168] : memref<32x128xf32, #tpu.memory_space<vmem>>, vector<1x32xf32>
    %302 = vector.broadcast %301 : vector<1x32xf32> to vector<16x32xf32>
    %303 = arith.addf %300, %302 : vector<16x32xf32>
    %c32 = arith.constant 32 : index
    %c0_169 = arith.constant 0 : index
    %304 = vector.load %arg2[%c32, %c0_169] : memref<64x128xf32, #tpu.memory_space<vmem>>, vector<32x128xf32>
    %cst_170 = arith.constant dense<0.000000e+00> : vector<16x128xf32>
    %305 = tpu.matmul %303, %304, %cst_170 {dimension_numbers = #tpu.dot_dimension_numbers<[1], [0], [0], [1], [0, 0, 1, 1], [], []>} : vector<16x32xf32>, vector<32x128xf32>, vector<16x128xf32> -> vector<16x128xf32>
    %c6_171 = arith.constant 6 : index
    %c0_172 = arith.constant 0 : index
    %306 = vector.load %arg1[%c6_171, %c0_172] : memref<32x128xf32, #tpu.memory_space<vmem>>, vector<1x128xf32>
    %307 = vector.broadcast %306 : vector<1x128xf32> to vector<16x128xf32>
    %308 = arith.addf %305, %307 : vector<16x128xf32>
    %cst_173 = arith.constant 5.000000e-01 : f32
    %309 = vector.broadcast %cst_173 : f32 to vector<16x128xf32>
    %310 = arith.mulf %309, %308 : vector<16x128xf32>
    %cst_174 = arith.constant 4.471500e-02 : f32
    %311 = vector.broadcast %cst_174 : f32 to vector<16x128xf32>
    %312 = arith.mulf %311, %308 : vector<16x128xf32>
    %313 = arith.mulf %312, %308 : vector<16x128xf32>
    %314 = arith.mulf %313, %308 : vector<16x128xf32>
    %315 = arith.addf %308, %314 : vector<16x128xf32>
    %cst_175 = arith.constant 0.797884583 : f32
    %316 = vector.broadcast %cst_175 : f32 to vector<16x128xf32>
    %317 = arith.mulf %316, %315 : vector<16x128xf32>
    %318 = math.tanh %317 : vector<16x128xf32>
    %cst_176 = arith.constant 1.000000e+00 : f32
    %319 = vector.broadcast %cst_176 : f32 to vector<16x128xf32>
    %320 = arith.addf %319, %318 : vector<16x128xf32>
    %321 = arith.mulf %310, %320 : vector<16x128xf32>
    %c64_177 = arith.constant 64 : index
    %c0_178 = arith.constant 0 : index
    %322 = vector.load %arg4[%c64_177, %c0_178] : memref<192x32xf32, #tpu.memory_space<vmem>>, vector<128x32xf32>
    %cst_179 = arith.constant dense<0.000000e+00> : vector<16x32xf32>
    %323 = tpu.matmul %321, %322, %cst_179 {dimension_numbers = #tpu.dot_dimension_numbers<[1], [0], [0], [1], [0, 0, 1, 1], [], []>} : vector<16x128xf32>, vector<128x32xf32>, vector<16x32xf32> -> vector<16x32xf32>
    %c7_180 = arith.constant 7 : index
    %c0_181 = arith.constant 0 : index
    %324 = vector.load %arg1[%c7_180, %c0_181] : memref<32x128xf32, #tpu.memory_space<vmem>>, vector<1x32xf32>
    %325 = vector.broadcast %324 : vector<1x32xf32> to vector<16x32xf32>
    %326 = arith.addf %323, %325 : vector<16x32xf32>
    %327 = arith.addf %277, %326 : vector<16x32xf32>
    %c0_182 = arith.constant 0 : index
    %c0_183 = arith.constant 0 : index
    %328 = vector.load %arg7[%c0_182, %c0_183] : memref<16x32xf32, #tpu.memory_space<vmem>>, vector<16x32xf32>
    tpu.vector_store %arg7[%c0_182, %c0_183], %327 {strides = array<i32>} : memref<16x32xf32, #tpu.memory_space<vmem>>, vector<16x32xf32>,
    return
  }
}

</mosaic_0001>

<llo_original>
// kernel: tpu_custom_call.1
$region0: #{tpu_custom_call.1}
  #allocation0 [shape = 'u32[]', space=smem, size = 0x4, offset = 0x4, fixed_abs, tag = 'smem constant byte address 0x4 - core index']
  #allocation1 [shape = 'u32[144,128]{1,0:T(1,128)}', space=vmem, size = 0x12000, scoped, tag = 'internal scratch']
  #allocation2 [shape = 'f32[8,16,128]{2,1,0:T(8,128)}', space=vmem, size = 0x10000, scoped, tag = 'scratch operand']
  #allocation3 [shape = 'f32[8,16,128]{2,1,0:T(8,128)}', space=vmem, size = 0x10000, scoped, tag = 'scratch operand']
  #allocation4 [shape = 'f32[32,1024]{1,0:T(8,128)}', space=vmem, size = 0x20000, scoped, tag = 'scratch operand']
  %s0 = inlined_call_operand.hbm [shape: f32[16,32], index: 0, kind: input, shape index: {}, may-alias: {0,7}]
  %s1 = inlined_call_operand.vmem [shape: f32[32,128], index: 1, kind: input, shape index: {}]
  %s2 = inlined_call_operand.vmem [shape: f32[64,128], index: 2, kind: input, shape index: {}]
  %s3 = inlined_call_operand.vmem [shape: f32[96,64], index: 3, kind: input, shape index: {}]
  %s4 = inlined_call_operand.vmem [shape: f32[192,32], index: 4, kind: input, shape index: {}]
  %s5 = inlined_call_operand.vmem [shape: f32[48,16], index: 5, kind: input, shape index: {}]
  %s6 = inlined_call_operand.vmem [shape: f32[16,1024], index: 6, kind: input, shape index: {}]
  %s7 = inlined_call_operand.hbm [shape: f32[16,32], index: 7, kind: output, shape index: {}, may-alias: {0,7}]
  %s8 = sld [smem:[#allocation0]]
  $region42: #{tpu_custom_call.1} parent=0
    _
  %s10 = ssub.s32 1, %s8
  %s11 = scalar_select 0, %s10, %s8
  $region1: #{tpu_custom_call.1} parent=0
    #allocation5 [shape = 'u8[8192]{0}', space=vmem, size = 0x2000, scoped, tag = 'input window, operand 0, single buffered']
    #allocation6 [shape = 's32[1]{0}', space=sflag, size = 0x4, scoped, tag = 'scoped memory for tpu_custom_call.1']
    #allocation7 [shape = 's32[1]{0}', space=sflag, size = 0x4, scoped, tag = 'scoped memory for tpu_custom_call.1']
    #allocation8 [shape = 'u8[8192]{0}', space=vmem, size = 0x2000, scoped, tag = 'output window, operand 0, single buffered']
    %12 = vsyncpa [#allocation6], 0
    %13 = vsyncpa [#allocation7], 0
    // Predicated region
    $region2: #{tpu_custom_call.1} parent=1 // pred_check
      _
    $region3: #{tpu_custom_call.1} parent=1 // pred_check_branch
      %15 = sbr.rel (0) target = $region5
    $region4: #{tpu_custom_call.1} parent=1 // pred_region
      %s17 = ssub.s32 256, 256
      %18 = vsyncadd [#allocation6], %s17
      %s19 = sshll.u32 [#allocation5], 4
      %s20 = int_to_ptr.vmem [resolvable:$true] %s19
      %25 = dma.hbm_to_vmem [thread:$0]  %s0, 256, %s20, [#allocation6], 128, 128, 8
    $region5: #{tpu_custom_call.1} parent=1 // pred_fallthru
      _
    // Predicated region
    $region6: #{tpu_custom_call.1} parent=1 // pred_check
      _
    $region7: #{tpu_custom_call.1} parent=1 // pred_check_branch
      %27 = sbr.rel (0) target = $region9
    $region8: #{tpu_custom_call.1} parent=1 // pred_region
      _
    $region9: #{tpu_custom_call.1} parent=1 // pred_fallthru
      _
    // Predicated region
    $region10: #{tpu_custom_call.1} parent=1 // pred_check
      _
    $region11: #{tpu_custom_call.1} parent=1 // pred_check_branch
      %29 = sbr.rel (0) target = $region13
    $region12: #{tpu_custom_call.1} parent=1 // pred_region
      _
    $region13: #{tpu_custom_call.1} parent=1 // pred_fallthru
      _
    // Predicated region
    $region14: #{tpu_custom_call.1} parent=1 // pred_check
      _
    $region15: #{tpu_custom_call.1} parent=1 // pred_check_branch
      %31 = sbr.rel (0) target = $region17
    $region16: #{tpu_custom_call.1} parent=1 // pred_region
      _
    $region17: #{tpu_custom_call.1} parent=1 // pred_fallthru
      _
    // Predicated region
    $region18: #{tpu_custom_call.1} parent=1 // pred_check
      _
    $region19: #{tpu_custom_call.1} parent=1 // pred_check_branch
      %33 = sbr.rel (0) target = $region21
    $region20: #{tpu_custom_call.1} parent=1 // pred_region
      _
    $region21: #{tpu_custom_call.1} parent=1 // pred_fallthru
      _
    // Predicated region
    $region22: #{tpu_custom_call.1} parent=1 // pred_check
      _
    $region23: #{tpu_custom_call.1} parent=1 // pred_check_branch
      %35 = sbr.rel (0) target = $region25
    $region24: #{tpu_custom_call.1} parent=1 // pred_region
      _
    $region25: #{tpu_custom_call.1} parent=1 // pred_fallthru
      _
    // Predicated region
    $region26: #{tpu_custom_call.1} parent=1 // pred_check
      _
    $region27: #{tpu_custom_call.1} parent=1 // pred_check_branch
      %37 = sbr.rel (0) target = $region29
    $region28: #{tpu_custom_call.1} parent=1 // pred_region
      _
    $region29: #{tpu_custom_call.1} parent=1 // pred_fallthru
      _
    // Predicated region
    $region30: #{tpu_custom_call.1} parent=1 // pred_check
      _
    $region31: #{tpu_custom_call.1} parent=1 // pred_check_branch
      %39 = sbr.rel (0) target = $region33
    $region32: #{tpu_custom_call.1} parent=1 // pred_region
      %40 = dma.done [#allocation6], 256
    $region33: #{tpu_custom_call.1} parent=1 // pred_fallthru
      _
    %v41 = vld [vmem:[#allocation5] sm:$0xff]
    %v42 = vld [vmem:[#allocation5 + $0x8] sm:$0xff]
    %v43 = vmul.f32 %v41, %v41
    %v44 = vmul.f32 %v42, %v42
    %vm45 = vcmask 261120
    %v46 = vsel %vm45, %v43, 0.0
    %47 = vadd.xlane.f32.xlu0 %v46
    %v48 = vpop.xlane.xlu0 %47
    %v49 = vsel %vm45, %v44, 0.0
    %50 = vadd.xlane.f32.xlu0 %v49
    %v51 = vpop.xlane.xlu0 %50
    %v52 = vrcp.pop 32.0
    %v53 = vmul.f32 %v48, %v52
    %v54 = vmul.f32 %v51, %v52
    %v55 = vadd.f32 %v53, 1e-05
    %v56 = vadd.f32 %v54, 1e-05
    %v57 = vrsqrt.pop %v55
    %v58 = vrsqrt.pop %v56
    %v59 = vmul.f32 %v41, %v57
    %v60 = vmul.f32 %v42, %v58
    %v61 = vld [vmem:[%s1] sm:$0x1]
    %v62 = vlaneseq
    %v63 = vshrl.u32 %v62, 7
    %v64 = vsub.s32 0, %v63
    %v65 = vrot.slane %v61, %v64
    %v66 = vmul.f32 %v59, %v65
    %v67 = vmul.f32 %v60, %v65
    %v68 = vld [vmem:[%s2] sm:$0xff]
    %v69 = vld [vmem:[%s2 + $0x8] sm:$0xff]
    %v70 = vld [vmem:[%s2 + $0x10] sm:$0xff]
    %v71 = vld [vmem:[%s2 + $0x18] sm:$0xff]
    %v73 = vsel %vm45, %v66, 0
    %v76 = vsel %vm45, %v67, 0
    %78 = vmatprep.subr.mxu0 0.0
    %79 = vmatpush1.msra.mxu0 %v68
    %80 = vmatprep.subr.mxu0 0.0
    %81 = vmatpush1.msra.mxu0 %v69
    %82 = vmatprep.subr.mxu0 0.0
    %83 = vmatpush1.msra.mxu0 %v70
    %84 = vmatprep.subr.mxu0 0.0
    %85 = vmatpush1.msra.mxu0 %v71
    %86 = vmatprep.subr.mxu0 0.0
    %87 = vmatpush1.msra.mxu0 0.0
    %88 = vmatprep.subr.mxu0 0.0
    %89 = vmatpush1.msra.mxu0 0.0
    %90 = vmatprep.subr.mxu0 0.0
    %91 = vmatpush1.msra.mxu0 0.0
    %92 = vmatprep.subr.mxu0 0.0
    %93 = vmatpush1.msra.mxu0 0.0
    %94 = vmatprep.subr.mxu0 0.0
    %95 = vmatpush1.msra.mxu0 0.0
    %96 = vmatprep.subr.mxu0 0.0
    %97 = vmatpush1.msra.mxu0 0.0
    %98 = vmatprep.subr.mxu0 0.0
    %99 = vmatpush1.msra.mxu0 0.0
    %100 = vmatprep.subr.mxu0 0.0
    %101 = vmatpush1.msra.mxu0 0.0
    %102 = vmatprep.subr.mxu0 0.0
    %103 = vmatpush1.msra.mxu0 0.0
    %104 = vmatprep.subr.mxu0 0.0
    %105 = vmatpush1.msra.mxu0 0.0
    %106 = vmatprep.subr.mxu0 0.0
    %107 = vmatpush1.msra.mxu0 0.0
    %108 = vmatprep.subr.mxu0 0.0
    %109 = vmatpush1.msra.mxu0 0.0
    %110 = vmatprep.subr.mxu0 0.0
    %111 = vmatpush1.msra.mxu0 0.0
    %112 = vmatprep.subr.mxu0 0.0
    %113 = vmatpush1.msra.mxu0 0.0
    %114 = vmatprep.subr.mxu0 0.0
    %115 = vmatpush1.msra.mxu0 0.0
    %116 = vmatprep.subr.mxu0 0.0
    %117 = vmatpush1.msra.mxu0 0.0
    %118 = vmatprep.subr.mxu0 0.0
    %119 = vmatpush1.msra.mxu0 0.0
    %120 = vmatprep.subr.mxu0 0.0
    %121 = vmatpush1.msra.mxu0 0.0
    %122 = vmatprep.subr.mxu0 0.0
    %123 = vmatpush1.msra.mxu0 0.0
    %124 = vmatprep.subr.mxu0 0.0
    %125 = vmatpush1.msra.mxu0 0.0
    %126 = vmatprep.subr.mxu0 0.0
    %127 = vmatpush1.msra.mxu0 0.0
    %128 = vmatprep.subr.mxu0 0.0
    %129 = vmatpush1.msra.mxu0 0.0
    %130 = vmatprep.subr.mxu0 0.0
    %131 = vmatpush1.msra.mxu0 0.0
    %132 = vmatprep.subr.mxu0 0.0
    %133 = vmatpush1.msra.mxu0 0.0
    %134 = vmatprep.subr.mxu0 0.0
    %135 = vmatpush1.msra.mxu0 0.0
    %136 = vmatprep.subr.mxu0 0.0
    %137 = vmatpush1.msra.mxu0 0.0
    %138 = vmatprep.subr.mxu0 0.0
    %139 = vmatpush1.msra.mxu0 0.0
    %140 = vmatprep.subr.mxu0 0.0
    %141 = vmatpush1.msra.mxu0 0.0
    %142 = vmatprep.mubr.f32.mxu0 0.0
    %143 = vmatmul.mubr.f32.gmra.mrb[0].mxu0 %v73
    %v144 = vpop.f32.mrb[0].mxu0
    %v145 = vadd.f32 0.0, %v144
    %v146 = vpop.f32.mrb[0].mxu0
    %147 = vmatprep.mubr.f32.mxu0 0.0
    %148 = vmatmul.mubr.f32.gmra.mrb[0].mxu0 %v76
    %v149 = vpop.f32.mrb[0].mxu0
    %v150 = vadd.f32 0.0, %v149
    %v151 = vpop.f32.mrb[0].mxu0
    %152 = vdwg.mxu0
    %v153 = vld [vmem:[%s5] sm:$0xff]
    %v154 = vld [vmem:[%s5 + $0x8] sm:$0xff]
    %v155 = vld [vmem:[%s5 + $0x10] sm:$0xff]
    %v156 = vld [vmem:[%s5 + $0x18] sm:$0xff]
    %v157 = vld [vmem:[%s5 + $0x20] sm:$0xff]
    %v158 = vld [vmem:[%s5 + $0x28] sm:$0xff]
    %vm159 = vcmask 130048
    %v161 = vsel %vm159, %v153, 0
    %v164 = vsel %vm159, %v154, 0
    %v167 = vsel %vm159, %v155, 0
    %v170 = vsel %vm159, %v156, 0
    %v173 = vsel %vm159, %v157, 0
    %v176 = vsel %vm159, %v158, 0
    %178 = vmatprep.subr.mxu0 0.0
    %179 = vmatpush1.msra.mxu0 %v145
    %180 = vmatprep.subr.mxu0 0.0
    %181 = vmatpush1.msra.mxu0 %v150
    %182 = vmatprep.subr.mxu0 0.0
    %183 = vmatpush1.msra.mxu0 0.0
    %184 = vmatprep.subr.mxu0 0.0
    %185 = vmatpush1.msra.mxu0 0.0
    %186 = vmatprep.subr.mxu0 0.0
    %187 = vmatpush1.msra.mxu0 0.0
    %188 = vmatprep.subr.mxu0 0.0
    %189 = vmatpush1.msra.mxu0 0.0
    %190 = vmatprep.subr.mxu0 0.0
    %191 = vmatpush1.msra.mxu0 0.0
    %192 = vmatprep.subr.mxu0 0.0
    %193 = vmatpush1.msra.mxu0 0.0
    %194 = vmatprep.subr.mxu0 0.0
    %195 = vmatpush1.msra.mxu0 0.0
    %196 = vmatprep.subr.mxu0 0.0
    %197 = vmatpush1.msra.mxu0 0.0
    %198 = vmatprep.subr.mxu0 0.0
    %199 = vmatpush1.msra.mxu0 0.0
    %200 = vmatprep.subr.mxu0 0.0
    %201 = vmatpush1.msra.mxu0 0.0
    %202 = vmatprep.subr.mxu0 0.0
    %203 = vmatpush1.msra.mxu0 0.0
    %204 = vmatprep.subr.mxu0 0.0
    %205 = vmatpush1.msra.mxu0 0.0
    %206 = vmatprep.subr.mxu0 0.0
    %207 = vmatpush1.msra.mxu0 0.0
    %208 = vmatprep.subr.mxu0 0.0
    %209 = vmatpush1.msra.mxu0 0.0
    %210 = vmatprep.subr.mxu0 0.0
    %211 = vmatpush1.msra.mxu0 0.0
    %212 = vmatprep.subr.mxu0 0.0
    %213 = vmatpush1.msra.mxu0 0.0
    %214 = vmatprep.subr.mxu0 0.0
    %215 = vmatpush1.msra.mxu0 0.0
    %216 = vmatprep.subr.mxu0 0.0
    %217 = vmatpush1.msra.mxu0 0.0
    %218 = vmatprep.subr.mxu0 0.0
    %219 = vmatpush1.msra.mxu0 0.0
    %220 = vmatprep.subr.mxu0 0.0
    %221 = vmatpush1.msra.mxu0 0.0
    %222 = vmatprep.subr.mxu0 0.0
    %223 = vmatpush1.msra.mxu0 0.0
    %224 = vmatprep.subr.mxu0 0.0
    %225 = vmatpush1.msra.mxu0 0.0
    %226 = vmatprep.subr.mxu0 0.0
    %227 = vmatpush1.msra.mxu0 0.0
    %228 = vmatprep.subr.mxu0 0.0
    %229 = vmatpush1.msra.mxu0 0.0
    %230 = vmatprep.subr.mxu0 0.0
    %231 = vmatpush1.msra.mxu0 0.0
    %232 = vmatprep.subr.mxu0 0.0
    %233 = vmatpush1.msra.mxu0 0.0
    %234 = vmatprep.subr.mxu0 0.0
    %235 = vmatpush1.msra.mxu0 0.0
    %236 = vmatprep.subr.mxu0 0.0
    %237 = vmatpush1.msra.mxu0 0.0
    %238 = vmatprep.subr.mxu0 0.0
    %239 = vmatpush1.msra.mxu0 0.0
    %240 = vmatprep.subr.mxu0 0.0
    %241 = vmatpush1.msra.mxu0 0.0
    %242 = vmatprep.mubr.f32.mxu0 0.0
    %243 = vmatmul.mubr.f32.gmra.mrb[0].mxu0 %v161
    %v244 = vpop.f32.mrb[0].mxu0
    %v245 = vadd.f32 0.0, %v244
    %v246 = vpop.f32.mrb[0].mxu0
    %247 = vmatprep.mubr.f32.mxu0 0.0
    %248 = vmatmul.mubr.f32.gmra.mrb[0].mxu0 %v164
    %v249 = vpop.f32.mrb[0].mxu0
    %v250 = vadd.f32 0.0, %v249
    %v251 = vpop.f32.mrb[0].mxu0
    %252 = vmatprep.mubr.f32.mxu0 0.0
    %253 = vmatmul.mubr.f32.gmra.mrb[0].mxu0 %v167
    %v254 = vpop.f32.mrb[0].mxu0
    %v255 = vadd.f32 0.0, %v254
    %v256 = vpop.f32.mrb[0].mxu0
    %257 = vmatprep.mubr.f32.mxu0 0.0
    %258 = vmatmul.mubr.f32.gmra.mrb[0].mxu0 %v170
    %v259 = vpop.f32.mrb[0].mxu0
    %v260 = vadd.f32 0.0, %v259
    %v261 = vpop.f32.mrb[0].mxu0
    %262 = vmatprep.mubr.f32.mxu0 0.0
    %263 = vmatmul.mubr.f32.gmra.mrb[0].mxu0 %v173
    %v264 = vpop.f32.mrb[0].mxu0
    %v265 = vadd.f32 0.0, %v264
    %v266 = vpop.f32.mrb[0].mxu0
    %267 = vmatprep.mubr.f32.mxu0 0.0
    %268 = vmatmul.mubr.f32.gmra.mrb[0].mxu0 %v176
    %v269 = vpop.f32.mrb[0].mxu0
    %v270 = vadd.f32 0.0, %v269
    %v271 = vpop.f32.mrb[0].mxu0
    %272 = vdwg.mxu0
    %v273 = vld [vmem:[%s1 + $0xb] sm:$0x1]
    %v274 = vlaneseq
    %v275 = vshrl.u32 %v274, 7
    %v276 = vsub.s32 0, %v275
    %v277 = vrot.slane %v273, %v276
    %v278 = vmul.f32 %v145, %v277
    %v279 = vmul.f32 %v150, %v277
    %v280 = vld [vmem:[%s1 + $0xa] sm:$0x1]
    %v281 = vlaneseq
    %v282 = vshrl.u32 %v281, 7
    %v283 = vsub.s32 0, %v282
    %v284 = vrot.slane %v280, %v283
    %v285 = vmul.f32 %v245, %v284
    %v286 = vmul.f32 %v250, %v284
    %v287 = vadd.f32 %v278, %v285
    %v288 = vadd.f32 %v279, %v286
    %v289 = vld [vmem:[%s1 + $0x9] sm:$0x1]
    %v290 = vlaneseq
    %v291 = vshrl.u32 %v290, 7
    %v292 = vsub.s32 0, %v291
    %v293 = vrot.slane %v289, %v292
    %v294 = vmul.f32 %v255, %v293
    %v295 = vmul.f32 %v260, %v293
    %v296 = vadd.f32 %v287, %v294
    %v297 = vadd.f32 %v288, %v295
    %v298 = vld [vmem:[%s1 + $0x8] sm:$0x1]
    %v299 = vlaneseq
    %v300 = vshrl.u32 %v299, 7
    %v301 = vsub.s32 0, %v300
    %v302 = vrot.slane %v298, %v301
    %v303 = vmul.f32 %v265, %v302
    %v304 = vmul.f32 %v270, %v302
    %v305 = vadd.f32 %v296, %v303
    %v306 = vadd.f32 %v297, %v304
    %v307 = vld [vmem:[%s1 + $0x1] sm:$0x1]
    %v308 = vlaneseq
    %v309 = vshrl.u32 %v308, 7
    %v310 = vsub.s32 0, %v309
    %v311 = vrot.slane %v307, %v310
    %v312 = vadd.f32 %v305, %v311
    %v313 = vadd.f32 %v306, %v311
    %v314 = vmul.f32 %v312, 0.5
    %v315 = vmul.f32 %v313, 0.5
    %v316 = vtanh.pop %v314
    %v317 = vtanh.pop %v315
    %v318 = vadd.f32 %v316, 1.0
    %v319 = vadd.f32 %v317, 1.0
    %v320 = vmul.f32 %v318, 0.5
    %v321 = vmul.f32 %v319, 0.5
    %v322 = vmul.f32 %v312, %v320
    %v323 = vmul.f32 %v313, %v321
    %v324 = vld [vmem:[%s3 + $0x40] sm:$0xff]
    %v325 = vld [vmem:[%s3 + $0x48] sm:$0xff]
    %v326 = vld [vmem:[%s3 + $0x50] sm:$0xff]
    %v327 = vld [vmem:[%s3 + $0x58] sm:$0xff]
    %vm328 = vcmask 523264
    %v330 = vsel %vm328, %v324, 0
    %v333 = vsel %vm328, %v325, 0
    %v336 = vsel %vm328, %v326, 0
    %v339 = vsel %vm328, %v327, 0
    %v342 = vsel %vm328, %v322, 0
    %v345 = vsel %vm328, %v323, 0
    %347 = vmatprep.subr.mxu0 0.0
    %348 = vmatpush1.xpose.msra.mxu0 %v342
    %349 = vmatprep.subr.mxu0 0.0
    %350 = vmatpush1.xpose.msra.mxu0 %v345
    %351 = vmatprep.subr.mxu0 0.0
    %352 = vmatpush1.xpose.msra.mxu0 0.0
    %353 = vmatprep.subr.mxu0 0.0
    %354 = vmatpush1.xpose.msra.mxu0 0.0
    %355 = vmatprep.subr.mxu0 0.0
    %356 = vmatpush1.xpose.msra.mxu0 0.0
    %357 = vmatprep.subr.mxu0 0.0
    %358 = vmatpush1.xpose.msra.mxu0 0.0
    %359 = vmatprep.subr.mxu0 0.0
    %360 = vmatpush1.xpose.msra.mxu0 0.0
    %361 = vmatprep.subr.mxu0 0.0
    %362 = vmatpush1.xpose.msra.mxu0 0.0
    %363 = vmatprep.subr.mxu0 0.0
    %364 = vmatpush1.xpose.msra.mxu0 0.0
    %365 = vmatprep.subr.mxu0 0.0
    %366 = vmatpush1.xpose.msra.mxu0 0.0
    %367 = vmatprep.subr.mxu0 0.0
    %368 = vmatpush1.xpose.msra.mxu0 0.0
    %369 = vmatprep.subr.mxu0 0.0
    %370 = vmatpush1.xpose.msra.mxu0 0.0
    %371 = vmatprep.subr.mxu0 0.0
    %372 = vmatpush1.xpose.msra.mxu0 0.0
    %373 = vmatprep.subr.mxu0 0.0
    %374 = vmatpush1.xpose.msra.mxu0 0.0
    %375 = vmatprep.subr.mxu0 0.0
    %376 = vmatpush1.xpose.msra.mxu0 0.0
    %377 = vmatprep.subr.mxu0 0.0
    %378 = vmatpush1.xpose.msra.mxu0 0.0
    %379 = vmatprep.subr.mxu0 0.0
    %380 = vmatpush1.xpose.msra.mxu0 0.0
    %381 = vmatprep.subr.mxu0 0.0
    %382 = vmatpush1.xpose.msra.mxu0 0.0
    %383 = vmatprep.subr.mxu0 0.0
    %384 = vmatpush1.xpose.msra.mxu0 0.0
    %385 = vmatprep.subr.mxu0 0.0
    %386 = vmatpush1.xpose.msra.mxu0 0.0
    %387 = vmatprep.subr.mxu0 0.0
    %388 = vmatpush1.xpose.msra.mxu0 0.0
    %389 = vmatprep.subr.mxu0 0.0
    %390 = vmatpush1.xpose.msra.mxu0 0.0
    %391 = vmatprep.subr.mxu0 0.0
    %392 = vmatpush1.xpose.msra.mxu0 0.0
    %393 = vmatprep.subr.mxu0 0.0
    %394 = vmatpush1.xpose.msra.mxu0 0.0
    %395 = vmatprep.subr.mxu0 0.0
    %396 = vmatpush1.xpose.msra.mxu0 0.0
    %397 = vmatprep.subr.mxu0 0.0
    %398 = vmatpush1.xpose.msra.mxu0 0.0
    %399 = vmatprep.subr.mxu0 0.0
    %400 = vmatpush1.xpose.msra.mxu0 0.0
    %401 = vmatprep.subr.mxu0 0.0
    %402 = vmatpush1.xpose.msra.mxu0 0.0
    %403 = vmatprep.subr.mxu0 0.0
    %404 = vmatpush1.xpose.msra.mxu0 0.0
    %405 = vmatprep.subr.mxu0 0.0
    %406 = vmatpush1.xpose.msra.mxu0 0.0
    %407 = vmatprep.subr.mxu0 0.0
    %408 = vmatpush1.xpose.msra.mxu0 0.0
    %409 = vmatprep.subr.mxu0 0.0
    %410 = vmatpush1.xpose.msra.mxu0 0.0
    %411 = vmatprep.mubr.f32.mxu0 0.0
    %412 = vmatmul.mubr.f32.gmra.mrb[0].mxu0 %v330
    %v413 = vpop.f32.mrb[0].mxu0
    %v414 = vadd.f32 0.0, %v413
    %v415 = vpop.f32.mrb[0].mxu0
    %416 = vmatprep.mubr.f32.mxu0 0.0
    %417 = vmatmul.mubr.f32.gmra.mrb[0].mxu0 %v333
    %v418 = vpop.f32.mrb[0].mxu0
    %v419 = vadd.f32 0.0, %v418
    %v420 = vpop.f32.mrb[0].mxu0
    %421 = vmatprep.mubr.f32.mxu0 0.0
    %422 = vmatmul.mubr.f32.gmra.mrb[0].mxu0 %v336
    %v423 = vpop.f32.mrb[0].mxu0
    %v424 = vadd.f32 0.0, %v423
    %v425 = vpop.f32.mrb[0].mxu0
    %426 = vmatprep.mubr.f32.mxu0 0.0
    %427 = vmatmul.mubr.f32.gmra.mrb[0].mxu0 %v339
    %v428 = vpop.f32.mrb[0].mxu0
    %v429 = vadd.f32 0.0, %v428
    %v430 = vpop.f32.mrb[0].mxu0
    %431 = vdwg.mxu0
    %v432 = vld [vmem:[%s6] sm:$0xff]
    %v433 = vld [vmem:[%s6 + $0x8] sm:$0xff]
    %v434 = vld [vmem:[%s6 + $0x10] sm:$0xff]
    %v435 = vld [vmem:[%s6 + $0x18] sm:$0xff]
    %v436 = vld [vmem:[%s6 + $0x20] sm:$0xff]
    %v437 = vld [vmem:[%s6 + $0x28] sm:$0xff]
    %v438 = vld [vmem:[%s6 + $0x30] sm:$0xff]
    %v439 = vld [vmem:[%s6 + $0x38] sm:$0xff]
    %v440 = vld [vmem:[%s6 + $0x40] sm:$0xff]
    %v441 = vld [vmem:[%s6 + $0x48] sm:$0xff]
    %v442 = vld [vmem:[%s6 + $0x50] sm:$0xff]
    %v443 = vld [vmem:[%s6 + $0x58] sm:$0xff]
    %v444 = vld [vmem:[%s6 + $0x60] sm:$0xff]
    %v445 = vld [vmem:[%s6 + $0x68] sm:$0xff]
    %v446 = vld [vmem:[%s6 + $0x70] sm:$0xff]
    %v447 = vld [vmem:[%s6 + $0x78] sm:$0xff]
    %v449 = vsel %vm159, %v414, 0
    %v452 = vsel %vm159, %v419, 0
    %v455 = vsel %vm159, %v424, 0
    %v458 = vsel %vm159, %v429, 0
    %460 = vmatprep.subr.mxu0 %v433
    %461 = vmatpush1.msra.mxu0 %v432
    %462 = vmatprep.subr.mxu0 %v441
    %463 = vmatpush1.msra.mxu0 %v440
    %464 = vmatprep.subr.mxu0 0.0
    %465 = vmatpush1.msra.mxu0 0.0
    %466 = vmatprep.subr.mxu0 0.0
    %467 = vmatpush1.msra.mxu0 0.0
    %468 = vmatprep.subr.mxu0 0.0
    %469 = vmatpush1.msra.mxu0 0.0
    %470 = vmatprep.subr.mxu0 0.0
    %471 = vmatpush1.msra.mxu0 0.0
    %472 = vmatprep.subr.mxu0 0.0
    %473 = vmatpush1.msra.mxu0 0.0
    %474 = vmatprep.subr.mxu0 0.0
    %475 = vmatpush1.msra.mxu0 0.0
    %476 = vmatprep.subr.mxu0 0.0
    %477 = vmatpush1.msra.mxu0 0.0
    %478 = vmatprep.subr.mxu0 0.0
    %479 = vmatpush1.msra.mxu0 0.0
    %480 = vmatprep.subr.mxu0 0.0
    %481 = vmatpush1.msra.mxu0 0.0
    %482 = vmatprep.subr.mxu0 0.0
    %483 = vmatpush1.msra.mxu0 0.0
    %484 = vmatprep.subr.mxu0 0.0
    %485 = vmatpush1.msra.mxu0 0.0
    %486 = vmatprep.subr.mxu0 0.0
    %487 = vmatpush1.msra.mxu0 0.0
    %488 = vmatprep.subr.mxu0 0.0
    %489 = vmatpush1.msra.mxu0 0.0
    %490 = vmatprep.subr.mxu0 0.0
    %491 = vmatpush1.msra.mxu0 0.0
    %492 = vmatprep.subr.mxu0 0.0
    %493 = vmatpush1.msra.mxu0 0.0
    %494 = vmatprep.subr.mxu0 0.0
    %495 = vmatpush1.msra.mxu0 0.0
    %496 = vmatprep.subr.mxu0 0.0
    %497 = vmatpush1.msra.mxu0 0.0
    %498 = vmatprep.subr.mxu0 0.0
    %499 = vmatpush1.msra.mxu0 0.0
    %500 = vmatprep.subr.mxu0 0.0
    %501 = vmatpush1.msra.mxu0 0.0
    %502 = vmatprep.subr.mxu0 0.0
    %503 = vmatpush1.msra.mxu0 0.0
    %504 = vmatprep.subr.mxu0 0.0
    %505 = vmatpush1.msra.mxu0 0.0
    %506 = vmatprep.subr.mxu0 0.0
    %507 = vmatpush1.msra.mxu0 0.0
    %508 = vmatprep.subr.mxu0 0.0
    %509 = vmatpush1.msra.mxu0 0.0
    %510 = vmatprep.subr.mxu0 0.0
    %511 = vmatpush1.msra.mxu0 0.0
    %512 = vmatprep.subr.mxu0 0.0
    %513 = vmatpush1.msra.mxu0 0.0
    %514 = vmatprep.subr.mxu0 0.0
    %515 = vmatpush1.msra.mxu0 0.0
    %516 = vmatprep.subr.mxu0 0.0
    %517 = vmatpush1.msra.mxu0 0.0
    %518 = vmatprep.subr.mxu0 0.0
    %519 = vmatpush1.msra.mxu0 0.0
    %520 = vmatprep.subr.mxu0 0.0
    %521 = vmatpush1.msra.mxu0 0.0
    %522 = vmatprep.subr.mxu0 0.0
    %523 = vmatpush1.msra.mxu0 0.0
    %524 = vmatprep.mubr.f32.mxu0 0.0
    %525 = vmatmul.mubr.f32.gmra.mrb[0].mxu0 %v449
    %v526 = vpop.f32.mrb[0].mxu0
    %v527 = vadd.f32 0.0, %v526
    %v528 = vpop.f32.mrb[0].mxu0
    %v529 = vadd.f32 0.0, %v528
    %530 = vmatprep.mubr.f32.mxu0 0.0
    %531 = vmatmul.mubr.f32.gmra.mrb[0].mxu0 %v452
    %v532 = vpop.f32.mrb[0].mxu0
    %v533 = vadd.f32 0.0, %v532
    %v534 = vpop.f32.mrb[0].mxu0
    %v535 = vadd.f32 0.0, %v534
    %536 = vmatprep.mubr.f32.mxu0 0.0
    %537 = vmatmul.mubr.f32.gmra.mrb[0].mxu0 %v455
    %v538 = vpop.f32.mrb[0].mxu0
    %v539 = vadd.f32 0.0, %v538
    %v540 = vpop.f32.mrb[0].mxu0
    %v541 = vadd.f32 0.0, %v540
    %542 = vmatprep.mubr.f32.mxu0 0.0
    %543 = vmatmul.mubr.f32.gmra.mrb[0].mxu0 %v458
    %v544 = vpop.f32.mrb[0].mxu0
    %v545 = vadd.f32 0.0, %v544
    %v546 = vpop.f32.mrb[0].mxu0
    %v547 = vadd.f32 0.0, %v546
    %548 = vdwg.mxu0
    %549 = vmatprep.subr.mxu0 %v435
    %550 = vmatpush1.msra.mxu0 %v434
    %551 = vmatprep.subr.mxu0 %v443
    %552 = vmatpush1.msra.mxu0 %v442
    %553 = vmatprep.subr.mxu0 0.0
    %554 = vmatpush1.msra.mxu0 0.0
    %555 = vmatprep.subr.mxu0 0.0
    %556 = vmatpush1.msra.mxu0 0.0
    %557 = vmatprep.subr.mxu0 0.0
    %558 = vmatpush1.msra.mxu0 0.0
    %559 = vmatprep.subr.mxu0 0.0
    %560 = vmatpush1.msra.mxu0 0.0
    %561 = vmatprep.subr.mxu0 0.0
    %562 = vmatpush1.msra.mxu0 0.0
    %563 = vmatprep.subr.mxu0 0.0
    %564 = vmatpush1.msra.mxu0 0.0
    %565 = vmatprep.subr.mxu0 0.0
    %566 = vmatpush1.msra.mxu0 0.0
    %567 = vmatprep.subr.mxu0 0.0
    %568 = vmatpush1.msra.mxu0 0.0
    %569 = vmatprep.subr.mxu0 0.0
    %570 = vmatpush1.msra.mxu0 0.0
    %571 = vmatprep.subr.mxu0 0.0
    %572 = vmatpush1.msra.mxu0 0.0
    %573 = vmatprep.subr.mxu0 0.0
    %574 = vmatpush1.msra.mxu0 0.0
    %575 = vmatprep.subr.mxu0 0.0
    %576 = vmatpush1.msra.mxu0 0.0
    %577 = vmatprep.subr.mxu0 0.0
    %578 = vmatpush1.msra.mxu0 0.0
    %579 = vmatprep.subr.mxu0 0.0
    %580 = vmatpush1.msra.mxu0 0.0
    %581 = vmatprep.subr.mxu0 0.0
    %582 = vmatpush1.msra.mxu0 0.0
    %583 = vmatprep.subr.mxu0 0.0
    %584 = vmatpush1.msra.mxu0 0.0
    %585 = vmatprep.subr.mxu0 0.0
    %586 = vmatpush1.msra.mxu0 0.0
    %587 = vmatprep.subr.mxu0 0.0
    %588 = vmatpush1.msra.mxu0 0.0
    %589 = vmatprep.subr.mxu0 0.0
    %590 = vmatpush1.msra.mxu0 0.0
    %591 = vmatprep.subr.mxu0 0.0
    %592 = vmatpush1.msra.mxu0 0.0
    %593 = vmatprep.subr.mxu0 0.0
    %594 = vmatpush1.msra.mxu0 0.0
    %595 = vmatprep.subr.mxu0 0.0
    %596 = vmatpush1.msra.mxu0 0.0
    %597 = vmatprep.subr.mxu0 0.0
    %598 = vmatpush1.msra.mxu0 0.0
    %599 = vmatprep.subr.mxu0 0.0
    %600 = vmatpush1.msra.mxu0 0.0
    %601 = vmatprep.subr.mxu0 0.0
    %602 = vmatpush1.msra.mxu0 0.0
    %603 = vmatprep.subr.mxu0 0.0
    %604 = vmatpush1.msra.mxu0 0.0
    %605 = vmatprep.subr.mxu0 0.0
    %606 = vmatpush1.msra.mxu0 0.0
    %607 = vmatprep.subr.mxu0 0.0
    %608 = vmatpush1.msra.mxu0 0.0
    %609 = vmatprep.subr.mxu0 0.0
    %610 = vmatpush1.msra.mxu0 0.0
    %611 = vmatprep.subr.mxu0 0.0
    %612 = vmatpush1.msra.mxu0 0.0
    %613 = vmatprep.mubr.f32.mxu0 0.0
    %614 = vmatmul.mubr.f32.gmra.mrb[0].mxu0 %v449
    %v615 = vpop.f32.mrb[0].mxu0
    %v616 = vadd.f32 0.0, %v615
    %v617 = vpop.f32.mrb[0].mxu0
    %v618 = vadd.f32 0.0, %v617
    %619 = vmatprep.mubr.f32.mxu0 0.0
    %620 = vmatmul.mubr.f32.gmra.mrb[0].mxu0 %v452
    %v621 = vpop.f32.mrb[0].mxu0
    %v622 = vadd.f32 0.0, %v621
    %v623 = vpop.f32.mrb[0].mxu0
    %v624 = vadd.f32 0.0, %v623
    %625 = vmatprep.mubr.f32.mxu0 0.0
    %626 = vmatmul.mubr.f32.gmra.mrb[0].mxu0 %v455
    %v627 = vpop.f32.mrb[0].mxu0
    %v628 = vadd.f32 0.0, %v627
    %v629 = vpop.f32.mrb[0].mxu0
    %v630 = vadd.f32 0.0, %v629
    %631 = vmatprep.mubr.f32.mxu0 0.0
    %632 = vmatmul.mubr.f32.gmra.mrb[0].mxu0 %v458
    %v633 = vpop.f32.mrb[0].mxu0
    %v634 = vadd.f32 0.0, %v633
    %v635 = vpop.f32.mrb[0].mxu0
    %v636 = vadd.f32 0.0, %v635
    %637 = vdwg.mxu0
    %638 = vmatprep.subr.mxu0 %v437
    %639 = vmatpush1.msra.mxu0 %v436
    %640 = vmatprep.subr.mxu0 %v445
    %641 = vmatpush1.msra.mxu0 %v444
    %642 = vmatprep.subr.mxu0 0.0
    %643 = vmatpush1.msra.mxu0 0.0
    %644 = vmatprep.subr.mxu0 0.0
    %645 = vmatpush1.msra.mxu0 0.0
    %646 = vmatprep.subr.mxu0 0.0
    %647 = vmatpush1.msra.mxu0 0.0
    %648 = vmatprep.subr.mxu0 0.0
    %649 = vmatpush1.msra.mxu0 0.0
    %650 = vmatprep.subr.mxu0 0.0
    %651 = vmatpush1.msra.mxu0 0.0
    %652 = vmatprep.subr.mxu0 0.0
    %653 = vmatpush1.msra.mxu0 0.0
    %654 = vmatprep.subr.mxu0 0.0
    %655 = vmatpush1.msra.mxu0 0.0
    %656 = vmatprep.subr.mxu0 0.0
    %657 = vmatpush1.msra.mxu0 0.0
    %658 = vmatprep.subr.mxu0 0.0
    %659 = vmatpush1.msra.mxu0 0.0
    %660 = vmatprep.subr.mxu0 0.0
    %661 = vmatpush1.msra.mxu0 0.0
    %662 = vmatprep.subr.mxu0 0.0
    %663 = vmatpush1.msra.mxu0 0.0
    %664 = vmatprep.subr.mxu0 0.0
    %665 = vmatpush1.msra.mxu0 0.0
    %666 = vmatprep.subr.mxu0 0.0
    %667 = vmatpush1.msra.mxu0 0.0
    %668 = vmatprep.subr.mxu0 0.0
    %669 = vmatpush1.msra.mxu0 0.0
    %670 = vmatprep.subr.mxu0 0.0
    %671 = vmatpush1.msra.mxu0 0.0
    %672 = vmatprep.subr.mxu0 0.0
    %673 = vmatpush1.msra.mxu0 0.0
    %674 = vmatprep.subr.mxu0 0.0
    %675 = vmatpush1.msra.mxu0 0.0
    %676 = vmatprep.subr.mxu0 0.0
    %677 = vmatpush1.msra.mxu0 0.0
    %678 = vmatprep.subr.mxu0 0.0
    %679 = vmatpush1.msra.mxu0 0.0
    %680 = vmatprep.subr.mxu0 0.0
    %681 = vmatpush1.msra.mxu0 0.0
    %682 = vmatprep.subr.mxu0 0.0
    %683 = vmatpush1.msra.mxu0 0.0
    %684 = vmatprep.subr.mxu0 0.0
    %685 = vmatpush1.msra.mxu0 0.0
    %686 = vmatprep.subr.mxu0 0.0
    %687 = vmatpush1.msra.mxu0 0.0
    %688 = vmatprep.subr.mxu0 0.0
    %689 = vmatpush1.msra.mxu0 0.0
    %690 = vmatprep.subr.mxu0 0.0
    %691 = vmatpush1.msra.mxu0 0.0
    %692 = vmatprep.subr.mxu0 0.0
    %693 = vmatpush1.msra.mxu0 0.0
    %694 = vmatprep.subr.mxu0 0.0
    %695 = vmatpush1.msra.mxu0 0.0
    %696 = vmatprep.subr.mxu0 0.0
    %697 = vmatpush1.msra.mxu0 0.0
    %698 = vmatprep.subr.mxu0 0.0
    %699 = vmatpush1.msra.mxu0 0.0
    %700 = vmatprep.subr.mxu0 0.0
    %701 = vmatpush1.msra.mxu0 0.0
    %702 = vmatprep.mubr.f32.mxu0 0.0
    %703 = vmatmul.mubr.f32.gmra.mrb[0].mxu0 %v449
    %v704 = vpop.f32.mrb[0].mxu0
    %v705 = vadd.f32 0.0, %v704
    %v706 = vpop.f32.mrb[0].mxu0
    %v707 = vadd.f32 0.0, %v706
    %708 = vmatprep.mubr.f32.mxu0 0.0
    %709 = vmatmul.mubr.f32.gmra.mrb[0].mxu0 %v452
    %v710 = vpop.f32.mrb[0].mxu0
    %v711 = vadd.f32 0.0, %v710
    %v712 = vpop.f32.mrb[0].mxu0
    %v713 = vadd.f32 0.0, %v712
    %714 = vmatprep.mubr.f32.mxu0 0.0
    %715 = vmatmul.mubr.f32.gmra.mrb[0].mxu0 %v455
    %v716 = vpop.f32.mrb[0].mxu0
    %v717 = vadd.f32 0.0, %v716
    %v718 = vpop.f32.mrb[0].mxu0
    %v719 = vadd.f32 0.0, %v718
    %720 = vmatprep.mubr.f32.mxu0 0.0
    %721 = vmatmul.mubr.f32.gmra.mrb[0].mxu0 %v458
    %v722 = vpop.f32.mrb[0].mxu0
    %v723 = vadd.f32 0.0, %v722
    %v724 = vpop.f32.mrb[0].mxu0
    %v725 = vadd.f32 0.0, %v724
    %726 = vdwg.mxu0
    %727 = vmatprep.subr.mxu0 %v439
    %728 = vmatpush1.msra.mxu0 %v438
    %729 = vmatprep.subr.mxu0 %v447
    %730 = vmatpush1.msra.mxu0 %v446
    %731 = vmatprep.subr.mxu0 0.0
    %732 = vmatpush1.msra.mxu0 0.0
    %733 = vmatprep.subr.mxu0 0.0
    %734 = vmatpush1.msra.mxu0 0.0
    %735 = vmatprep.subr.mxu0 0.0
    %736 = vmatpush1.msra.mxu0 0.0
    %737 = vmatprep.subr.mxu0 0.0
    %738 = vmatpush1.msra.mxu0 0.0
    %739 = vmatprep.subr.mxu0 0.0
    %740 = vmatpush1.msra.mxu0 0.0
    %741 = vmatprep.subr.mxu0 0.0
    %742 = vmatpush1.msra.mxu0 0.0
    %743 = vmatprep.subr.mxu0 0.0
    %744 = vmatpush1.msra.mxu0 0.0
    %745 = vmatprep.subr.mxu0 0.0
    %746 = vmatpush1.msra.mxu0 0.0
    %747 = vmatprep.subr.mxu0 0.0
    %748 = vmatpush1.msra.mxu0 0.0
    %749 = vmatprep.subr.mxu0 0.0
    %750 = vmatpush1.msra.mxu0 0.0
    %751 = vmatprep.subr.mxu0 0.0
    %752 = vmatpush1.msra.mxu0 0.0
    %753 = vmatprep.subr.mxu0 0.0
    %754 = vmatpush1.msra.mxu0 0.0
    %755 = vmatprep.subr.mxu0 0.0
    %756 = vmatpush1.msra.mxu0 0.0
    %757 = vmatprep.subr.mxu0 0.0
    %758 = vmatpush1.msra.mxu0 0.0
    %759 = vmatprep.subr.mxu0 0.0
    %760 = vmatpush1.msra.mxu0 0.0
    %761 = vmatprep.subr.mxu0 0.0
    %762 = vmatpush1.msra.mxu0 0.0
    %763 = vmatprep.subr.mxu0 0.0
    %764 = vmatpush1.msra.mxu0 0.0
    %765 = vmatprep.subr.mxu0 0.0
    %766 = vmatpush1.msra.mxu0 0.0
    %767 = vmatprep.subr.mxu0 0.0
    %768 = vmatpush1.msra.mxu0 0.0
    %769 = vmatprep.subr.mxu0 0.0
    %770 = vmatpush1.msra.mxu0 0.0
    %771 = vmatprep.subr.mxu0 0.0
    %772 = vmatpush1.msra.mxu0 0.0
    %773 = vmatprep.subr.mxu0 0.0
    %774 = vmatpush1.msra.mxu0 0.0
    %775 = vmatprep.subr.mxu0 0.0
    %776 = vmatpush1.msra.mxu0 0.0
    %777 = vmatprep.subr.mxu0 0.0
    %778 = vmatpush1.msra.mxu0 0.0
    %779 = vmatprep.subr.mxu0 0.0
    %780 = vmatpush1.msra.mxu0 0.0
    %781 = vmatprep.subr.mxu0 0.0
    %782 = vmatpush1.msra.mxu0 0.0
    %783 = vmatprep.subr.mxu0 0.0
    %784 = vmatpush1.msra.mxu0 0.0
    %785 = vmatprep.subr.mxu0 0.0
    %786 = vmatpush1.msra.mxu0 0.0
    %787 = vmatprep.subr.mxu0 0.0
    %788 = vmatpush1.msra.mxu0 0.0
    %789 = vmatprep.subr.mxu0 0.0
    %790 = vmatpush1.msra.mxu0 0.0
    %791 = vmatprep.mubr.f32.mxu0 0.0
    %792 = vmatmul.mubr.f32.gmra.mrb[0].mxu0 %v449
    %v793 = vpop.f32.mrb[0].mxu0
    %v794 = vadd.f32 0.0, %v793
    %v795 = vpop.f32.mrb[0].mxu0
    %v796 = vadd.f32 0.0, %v795
    %797 = vmatprep.mubr.f32.mxu0 0.0
    %798 = vmatmul.mubr.f32.gmra.mrb[0].mxu0 %v452
    %v799 = vpop.f32.mrb[0].mxu0
    %v800 = vadd.f32 0.0, %v799
    %v801 = vpop.f32.mrb[0].mxu0
    %v802 = vadd.f32 0.0, %v801
    %803 = vmatprep.mubr.f32.mxu0 0.0
    %804 = vmatmul.mubr.f32.gmra.mrb[0].mxu0 %v455
    %v805 = vpop.f32.mrb[0].mxu0
    %v806 = vadd.f32 0.0, %v805
    %v807 = vpop.f32.mrb[0].mxu0
    %v808 = vadd.f32 0.0, %v807
    %809 = vmatprep.mubr.f32.mxu0 0.0
    %810 = vmatmul.mubr.f32.gmra.mrb[0].mxu0 %v458
    %v811 = vpop.f32.mrb[0].mxu0
    %v812 = vadd.f32 0.0, %v811
    %v813 = vpop.f32.mrb[0].mxu0
    %v814 = vadd.f32 0.0, %v813
    %815 = vdwg.mxu0
    %816 = vst [vmem:[#allocation4] sm:$0xff] %v527
    %817 = vst [vmem:[#allocation4 + $0x8] sm:$0xff] %v529
    %818 = vst [vmem:[#allocation4 + $0x10] sm:$0xff] %v616
    %819 = vst [vmem:[#allocation4 + $0x18] sm:$0xff] %v618
    %820 = vst [vmem:[#allocation4 + $0x20] sm:$0xff] %v705
    %821 = vst [vmem:[#allocation4 + $0x28] sm:$0xff] %v707
    %822 = vst [vmem:[#allocation4 + $0x30] sm:$0xff] %v794
    %823 = vst [vmem:[#allocation4 + $0x38] sm:$0xff] %v796
    %824 = vst [vmem:[#allocation4 + $0x40] sm:$0xff] %v533
    %825 = vst [vmem:[#allocation4 + $0x48] sm:$0xff] %v535
    %826 = vst [vmem:[#allocation4 + $0x50] sm:$0xff] %v622
    %827 = vst [vmem:[#allocation4 + $0x58] sm:$0xff] %v624
    %828 = vst [vmem:[#allocation4 + $0x60] sm:$0xff] %v711
    %829 = vst [vmem:[#allocation4 + $0x68] sm:$0xff] %v713
    %830 = vst [vmem:[#allocation4 + $0x70] sm:$0xff] %v800
    %831 = vst [vmem:[#allocation4 + $0x78] sm:$0xff] %v802
    %832 = vst [vmem:[#allocation4 + $0x80] sm:$0xff] %v539
    %833 = vst [vmem:[#allocation4 + $0x88] sm:$0xff] %v541
    %834 = vst [vmem:[#allocation4 + $0x90] sm:$0xff] %v628
    %835 = vst [vmem:[#allocation4 + $0x98] sm:$0xff] %v630
    %836 = vst [vmem:[#allocation4 + $0xa0] sm:$0xff] %v717
    %837 = vst [vmem:[#allocation4 + $0xa8] sm:$0xff] %v719
    %838 = vst [vmem:[#allocation4 + $0xb0] sm:$0xff] %v806
    %839 = vst [vmem:[#allocation4 + $0xb8] sm:$0xff] %v808
    %840 = vst [vmem:[#allocation4 + $0xc0] sm:$0xff] %v545
    %841 = vst [vmem:[#allocation4 + $0xc8] sm:$0xff] %v547
    %842 = vst [vmem:[#allocation4 + $0xd0] sm:$0xff] %v634
    %843 = vst [vmem:[#allocation4 + $0xd8] sm:$0xff] %v636
    %844 = vst [vmem:[#allocation4 + $0xe0] sm:$0xff] %v723
    %845 = vst [vmem:[#allocation4 + $0xe8] sm:$0xff] %v725
    %846 = vst [vmem:[#allocation4 + $0xf0] sm:$0xff] %v812
    %847 = vst [vmem:[#allocation4 + $0xf8] sm:$0xff] %v814
    %v848 = vld [vmem:[%s3] sm:$0xff]
    %v849 = vld [vmem:[%s3 + $0x8] sm:$0xff]
    %v850 = vld [vmem:[%s3 + $0x10] sm:$0xff]
    %v851 = vld [vmem:[%s3 + $0x18] sm:$0xff]
    %v852 = vld [vmem:[%s3 + $0x20] sm:$0xff]
    %v853 = vld [vmem:[%s3 + $0x28] sm:$0xff]
    %v854 = vld [vmem:[%s3 + $0x30] sm:$0xff]
    %v855 = vld [vmem:[%s3 + $0x38] sm:$0xff]
    %v856 = vld [vmem:[%s1 + $0x2] sm:$0x1]
    %v857 = vlaneseq
    %v858 = vshrl.u32 %v857, 7
    %v859 = vsub.s32 0, %v858
    %v860 = vrot.slane %v856, %v859
    %861 = vmatprep.subr.mxu0 0.0
    %862 = vmatpush1.msra.mxu0 %v848
    %863 = vmatprep.subr.mxu0 0.0
    %864 = vmatpush1.msra.mxu0 %v849
    %865 = vmatprep.subr.mxu0 0.0
    %866 = vmatpush1.msra.mxu0 %v850
    %867 = vmatprep.subr.mxu0 0.0
    %868 = vmatpush1.msra.mxu0 %v851
    %869 = vmatprep.subr.mxu0 0.0
    %870 = vmatpush1.msra.mxu0 %v852
    %871 = vmatprep.subr.mxu0 0.0
    %872 = vmatpush1.msra.mxu0 %v853
    %873 = vmatprep.subr.mxu0 0.0
    %874 = vmatpush1.msra.mxu0 %v854
    %875 = vmatprep.subr.mxu0 0.0
    %876 = vmatpush1.msra.mxu0 %v855
    %877 = vmatprep.subr.mxu0 0.0
    %878 = vmatpush1.msra.mxu0 0.0
    %879 = vmatprep.subr.mxu0 0.0
    %880 = vmatpush1.msra.mxu0 0.0
    %881 = vmatprep.subr.mxu0 0.0
    %882 = vmatpush1.msra.mxu0 0.0
    %883 = vmatprep.subr.mxu0 0.0
    %884 = vmatpush1.msra.mxu0 0.0
    %885 = vmatprep.subr.mxu0 0.0
    %886 = vmatpush1.msra.mxu0 0.0
    %887 = vmatprep.subr.mxu0 0.0
    %888 = vmatpush1.msra.mxu0 0.0
    %889 = vmatprep.subr.mxu0 0.0
    %890 = vmatpush1.msra.mxu0 0.0
    %891 = vmatprep.subr.mxu0 0.0
    %892 = vmatpush1.msra.mxu0 0.0
    %893 = vmatprep.subr.mxu0 0.0
    %894 = vmatpush1.msra.mxu0 0.0
    %895 = vmatprep.subr.mxu0 0.0
    %896 = vmatpush1.msra.mxu0 0.0
    %897 = vmatprep.subr.mxu0 0.0
    %898 = vmatpush1.msra.mxu0 0.0
    %899 = vmatprep.subr.mxu0 0.0
    %900 = vmatpush1.msra.mxu0 0.0
    %901 = vmatprep.subr.mxu0 0.0
    %902 = vmatpush1.msra.mxu0 0.0
    %903 = vmatprep.subr.mxu0 0.0
    %904 = vmatpush1.msra.mxu0 0.0
    %905 = vmatprep.subr.mxu0 0.0
    %906 = vmatpush1.msra.mxu0 0.0
    %907 = vmatprep.subr.mxu0 0.0
    %908 = vmatpush1.msra.mxu0 0.0
    %909 = vmatprep.subr.mxu0 0.0
    %910 = vmatpush1.msra.mxu0 0.0
    %911 = vmatprep.subr.mxu0 0.0
    %912 = vmatpush1.msra.mxu0 0.0
    %913 = vmatprep.subr.mxu0 0.0
    %914 = vmatpush1.msra.mxu0 0.0
    %915 = vmatprep.subr.mxu0 0.0
    %916 = vmatpush1.msra.mxu0 0.0
    %917 = vmatprep.subr.mxu0 0.0
    %918 = vmatpush1.msra.mxu0 0.0
    %919 = vmatprep.subr.mxu0 0.0
    %920 = vmatpush1.msra.mxu0 0.0
    %921 = vmatprep.subr.mxu0 0.0
    %922 = vmatpush1.msra.mxu0 0.0
    %923 = vmatprep.subr.mxu0 0.0
    %924 = vmatpush1.msra.mxu0 0.0
    %925 = vmatprep.mubr.f32.mxu0 0.0
    %926 = vmatmul.mubr.f32.gmra.mrb[0].mxu0 %v342
    %v927 = vpop.f32.mrb[0].mxu0
    %v928 = vadd.f32 %v860, %v927
    %v929 = vpop.f32.mrb[0].mxu0
    %930 = vmatprep.mubr.f32.mxu0 0.0
    %931 = vmatmul.mubr.f32.gmra.mrb[0].mxu0 %v345
    %v932 = vpop.f32.mrb[0].mxu0
    %v933 = vadd.f32 %v860, %v932
    %v934 = vpop.f32.mrb[0].mxu0
    %935 = vdwg.mxu0
    %v936 = vmax.f32 %v928, 0.0
    %v937 = vmax.f32 %v933, 0.0
    %v938 = vand.u32 2147483647, %v928
    %v939 = vand.u32 2147483647, %v933
    %v940 = vsub.f32 0.0, %v938
    %v941 = vsub.f32 0.0, %v939
    %v942 = vmul.f32 %v940, 1.442695
    %v943 = vpow.pop %v942
    %v944 = vmul.f32 %v941, 1.442695
    %v945 = vpow.pop %v944
    %v946 = vadd.f32 %v943, 1.0
    %v947 = vadd.f32 %v945, 1.0
    %v948 = vlog2.pop %v946
    %v949 = vmul.f32 %v948, 0.6931472
    %v950 = vlog2.pop %v947
    %v951 = vmul.f32 %v950, 0.6931472
    %v952 = vadd.f32 %v936, %v949
    %v953 = vadd.f32 %v937, %v951
    %v954 = vmul.f32 %v952, %v322
    %v955 = vmul.f32 %v953, %v323
    %957 = vrot.lane.b32.xlu0 %v953, 64
    %v958 = vpop.permute.xlu0 %957
    %v960 = vsel %vm328, %v952, %v958
    %962 = vrot.lane.b32.xlu0 %v955, 64
    %v963 = vpop.permute.xlu0 %962
    %v965 = vsel %vm328, %v954, %v963
    %v966 = vld [vmem:[%s1 + $0x10] sm:$0xff]
    %v967 = vld [vmem:[%s1 + $0x18] sm:$0xff]
    %v968 = vld [vmem:[#allocation4] sm:$0xff]
    %v969 = vld [vmem:[#allocation4 + $0x40] sm:$0xff]
    %v970 = vlaneseq
    %v971 = vshrl.u32 %v970, 7
    %v972 = vsub.s32 0, %v971
    %v973 = vrot.slane %v965, %v972
    %v974 = vmul.f32 %v973, %v968
    %v975 = vmul.f32 %v973, %v969
    %976 = vst [vmem:[#allocation3] sm:$0xff] %v974
    %977 = vst [vmem:[#allocation3 + $0x8] sm:$0xff] %v975
    %v978 = vlaneseq
    %v979 = vshrl.u32 %v978, 7
    %v980 = vsub.s32 1, %v979
    %v981 = vrot.slane %v960, %v980
    %v982 = vmul.f32 %v981, %v966
    %v983 = vmul.f32 %v981, %v967
    %v984 = vmul.f32 %v982, 1.442695
    %v985 = vpow.pop %v984
    %v986 = vmul.f32 %v983, 1.442695
    %v987 = vpow.pop %v986
    %s988 = scalar_lea.vmem [#allocation2], 16
    %989 = vst [vmem:[%s988] sm:$0xff] %v985
    %990 = vst [vmem:[%s988 + $0x8] sm:$0xff] %v987
    %v991 = vld [vmem:[#allocation4 + $0x8] sm:$0xff]
    %v992 = vld [vmem:[#allocation4 + $0x48] sm:$0xff]
    %v993 = vlaneseq
    %v994 = vshrl.u32 %v993, 7
    %v995 = vsub.s32 1, %v994
    %v996 = vrot.slane %v965, %v995
    %v997 = vmul.f32 %v996, %v991
    %v998 = vmul.f32 %v996, %v992
    %s999 = scalar_lea.vmem [#allocation3], 16
    %1000 = vst [vmem:[%s999] sm:$0xff] %v997
    %1001 = vst [vmem:[%s999 + $0x8] sm:$0xff] %v998
    %v1002 = vlaneseq
    %v1003 = vshrl.u32 %v1002, 7
    %v1004 = vsub.s32 2, %v1003
    %v1005 = vrot.slane %v960, %v1004
    %v1006 = vmul.f32 %v1005, %v966
    %v1007 = vmul.f32 %v1005, %v967
    %v1008 = vmul.f32 %v1006, 1.442695
    %v1009 = vpow.pop %v1008
    %v1010 = vmul.f32 %v1007, 1.442695
    %v1011 = vpow.pop %v1010
    %s1012 = scalar_lea.vmem [#allocation2], 32
    %1013 = vst [vmem:[%s1012] sm:$0xff] %v1009
    %1014 = vst [vmem:[%s1012 + $0x8] sm:$0xff] %v1011
    %v1015 = vld [vmem:[#allocation4 + $0x10] sm:$0xff]
    %v1016 = vld [vmem:[#allocation4 + $0x50] sm:$0xff]
    %v1017 = vlaneseq
    %v1018 = vshrl.u32 %v1017, 7
    %v1019 = vsub.s32 2, %v1018
    %v1020 = vrot.slane %v965, %v1019
    %v1021 = vmul.f32 %v1020, %v1015
    %v1022 = vmul.f32 %v1020, %v1016
    %s1023 = scalar_lea.vmem [#allocation3], 32
    %1024 = vst [vmem:[%s1023] sm:$0xff] %v1021
    %1025 = vst [vmem:[%s1023 + $0x8] sm:$0xff] %v1022
    %v1026 = vlaneseq
    %v1027 = vshrl.u32 %v1026, 7
    %v1028 = vsub.s32 3, %v1027
    %v1029 = vrot.slane %v960, %v1028
    %v1030 = vmul.f32 %v1029, %v966
    %v1031 = vmul.f32 %v1029, %v967
    %v1032 = vmul.f32 %v1030, 1.442695
    %v1033 = vpow.pop %v1032
    %v1034 = vmul.f32 %v1031, 1.442695
    %v1035 = vpow.pop %v1034
    %s1036 = scalar_lea.vmem [#allocation2], 48
    %1037 = vst [vmem:[%s1036] sm:$0xff] %v1033
    %1038 = vst [vmem:[%s1036 + $0x8] sm:$0xff] %v1035
    %v1039 = vld [vmem:[#allocation4 + $0x18] sm:$0xff]
    %v1040 = vld [vmem:[#allocation4 + $0x58] sm:$0xff]
    %v1041 = vlaneseq
    %v1042 = vshrl.u32 %v1041, 7
    %v1043 = vsub.s32 3, %v1042
    %v1044 = vrot.slane %v965, %v1043
    %v1045 = vmul.f32 %v1044, %v1039
    %v1046 = vmul.f32 %v1044, %v1040
    %s1047 = scalar_lea.vmem [#allocation3], 48
    %1048 = vst [vmem:[%s1047] sm:$0xff] %v1045
    %1049 = vst [vmem:[%s1047 + $0x8] sm:$0xff] %v1046
    %v1050 = vlaneseq
    %v1051 = vshrl.u32 %v1050, 7
    %v1052 = vsub.s32 4, %v1051
    %v1053 = vrot.slane %v960, %v1052
    %v1054 = vmul.f32 %v1053, %v966
    %v1055 = vmul.f32 %v1053, %v967
    %v1056 = vmul.f32 %v1054, 1.442695
    %v1057 = vpow.pop %v1056
    %v1058 = vmul.f32 %v1055, 1.442695
    %v1059 = vpow.pop %v1058
    %s1060 = scalar_lea.vmem [#allocation2], 64
    %1061 = vst [vmem:[%s1060] sm:$0xff] %v1057
    %1062 = vst [vmem:[%s1060 + $0x8] sm:$0xff] %v1059
    %v1063 = vld [vmem:[#allocation4 + $0x20] sm:$0xff]
    %v1064 = vld [vmem:[#allocation4 + $0x60] sm:$0xff]
    %v1065 = vlaneseq
    %v1066 = vshrl.u32 %v1065, 7
    %v1067 = vsub.s32 4, %v1066
    %v1068 = vrot.slane %v965, %v1067
    %v1069 = vmul.f32 %v1068, %v1063
    %v1070 = vmul.f32 %v1068, %v1064
    %s1071 = scalar_lea.vmem [#allocation3], 64
    %1072 = vst [vmem:[%s1071] sm:$0xff] %v1069
    %1073 = vst [vmem:[%s1071 + $0x8] sm:$0xff] %v1070
    %v1074 = vlaneseq
    %v1075 = vshrl.u32 %v1074, 7
    %v1076 = vsub.s32 5, %v1075
    %v1077 = vrot.slane %v960, %v1076
    %v1078 = vmul.f32 %v1077, %v966
    %v1079 = vmul.f32 %v1077, %v967
    %v1080 = vmul.f32 %v1078, 1.442695
    %v1081 = vpow.pop %v1080
    %v1082 = vmul.f32 %v1079, 1.442695
    %v1083 = vpow.pop %v1082
    %s1084 = scalar_lea.vmem [#allocation2], 80
    %1085 = vst [vmem:[%s1084] sm:$0xff] %v1081
    %1086 = vst [vmem:[%s1084 + $0x8] sm:$0xff] %v1083
    %v1087 = vld [vmem:[#allocation4 + $0x28] sm:$0xff]
    %v1088 = vld [vmem:[#allocation4 + $0x68] sm:$0xff]
    %v1089 = vlaneseq
    %v1090 = vshrl.u32 %v1089, 7
    %v1091 = vsub.s32 5, %v1090
    %v1092 = vrot.slane %v965, %v1091
    %v1093 = vmul.f32 %v1092, %v1087
    %v1094 = vmul.f32 %v1092, %v1088
    %s1095 = scalar_lea.vmem [#allocation3], 80
    %1096 = vst [vmem:[%s1095] sm:$0xff] %v1093
    %1097 = vst [vmem:[%s1095 + $0x8] sm:$0xff] %v1094
    %v1098 = vlaneseq
    %v1099 = vshrl.u32 %v1098, 7
    %v1100 = vsub.s32 6, %v1099
    %v1101 = vrot.slane %v960, %v1100
    %v1102 = vmul.f32 %v1101, %v966
    %v1103 = vmul.f32 %v1101, %v967
    %v1104 = vmul.f32 %v1102, 1.442695
    %v1105 = vpow.pop %v1104
    %v1106 = vmul.f32 %v1103, 1.442695
    %v1107 = vpow.pop %v1106
    %s1108 = scalar_lea.vmem [#allocation2], 96
    %1109 = vst [vmem:[%s1108] sm:$0xff] %v1105
    %1110 = vst [vmem:[%s1108 + $0x8] sm:$0xff] %v1107
    %v1111 = vld [vmem:[#allocation4 + $0x30] sm:$0xff]
    %v1112 = vld [vmem:[#allocation4 + $0x70] sm:$0xff]
    %v1113 = vlaneseq
    %v1114 = vshrl.u32 %v1113, 7
    %v1115 = vsub.s32 6, %v1114
    %v1116 = vrot.slane %v965, %v1115
    %v1117 = vmul.f32 %v1116, %v1111
    %v1118 = vmul.f32 %v1116, %v1112
    %s1119 = scalar_lea.vmem [#allocation3], 96
    %1120 = vst [vmem:[%s1119] sm:$0xff] %v1117
    %1121 = vst [vmem:[%s1119 + $0x8] sm:$0xff] %v1118
    %v1122 = vlaneseq
    %v1123 = vshrl.u32 %v1122, 7
    %v1124 = vsub.s32 7, %v1123
    %v1125 = vrot.slane %v960, %v1124
    %v1126 = vmul.f32 %v1125, %v966
    %v1127 = vmul.f32 %v1125, %v967
    %v1128 = vmul.f32 %v1126, 1.442695
    %v1129 = vpow.pop %v1128
    %v1130 = vmul.f32 %v1127, 1.442695
    %v1131 = vpow.pop %v1130
    %s1132 = scalar_lea.vmem [#allocation2], 112
    %1133 = vst [vmem:[%s1132] sm:$0xff] %v1129
    %1134 = vst [vmem:[%s1132 + $0x8] sm:$0xff] %v1131
    %v1135 = vld [vmem:[#allocation4 + $0x38] sm:$0xff]
    %v1136 = vld [vmem:[#allocation4 + $0x78] sm:$0xff]
    %v1137 = vlaneseq
    %v1138 = vshrl.u32 %v1137, 7
    %v1139 = vsub.s32 7, %v1138
    %v1140 = vrot.slane %v965, %v1139
    %v1141 = vmul.f32 %v1140, %v1135
    %v1142 = vmul.f32 %v1140, %v1136
    %s1143 = scalar_lea.vmem [#allocation3], 112
    %1144 = vst [vmem:[%s1143] sm:$0xff] %v1141
    %1145 = vst [vmem:[%s1143 + $0x8] sm:$0xff] %v1142
    %v1146 = vld [vmem:[#allocation3] sm:$0xff]
    %v1147 = vld [vmem:[#allocation3 + $0x8] sm:$0xff]
    %v1148 = vld [vmem:[#allocation4 + $0x80] sm:$0xff]
    %v1149 = vld [vmem:[#allocation4 + $0xc0] sm:$0xff]
    %v1150 = vmul.f32 %v1146, %v1148
    %v1151 = vmul.f32 %v1147, %v1149
    %v1152 = vadd.f32 %v1150, %v1151
    %v1153 = vrot.slane %v1152, 4
    %v1154 = vadd.f32 %v1152, %v1153
    %v1155 = vrot.slane %v1154, 2
    %v1156 = vadd.f32 %v1154, %v1155
    %v1157 = vrot.slane %v1156, 1
    %v1158 = vadd.f32 %v1156, %v1157
    %v1159 = vld [vmem:[%s988] sm:$0xff]
    %v1160 = vld [vmem:[%s988 + $0x8] sm:$0xff]
    %v1161 = vmul.f32 %v1159, %v1146
    %v1162 = vmul.f32 %v1160, %v1147
    %v1163 = vld [vmem:[%s999] sm:$0xff]
    %v1164 = vld [vmem:[%s999 + $0x8] sm:$0xff]
    %v1165 = vadd.f32 %v1161, %v1163
    %v1166 = vadd.f32 %v1162, %v1164
    %v1167 = vld [vmem:[#allocation4 + $0x88] sm:$0xff]
    %v1168 = vld [vmem:[#allocation4 + $0xc8] sm:$0xff]
    %v1169 = vmul.f32 %v1165, %v1167
    %v1170 = vmul.f32 %v1166, %v1168
    %v1171 = vadd.f32 %v1169, %v1170
    %v1172 = vrot.slane %v1171, 4
    %v1173 = vadd.f32 %v1171, %v1172
    %v1174 = vrot.slane %v1173, 2
    %v1175 = vadd.f32 %v1173, %v1174
    %v1176 = vrot.slane %v1175, 1
    %v1177 = vadd.f32 %v1175, %v1176
    %v1178 = vld [vmem:[%s1012] sm:$0xff]
    %v1179 = vld [vmem:[%s1012 + $0x8] sm:$0xff]
    %v1180 = vmul.f32 %v1178, %v1165
    %v1181 = vmul.f32 %v1179, %v1166
    %v1182 = vld [vmem:[%s1023] sm:$0xff]
    %v1183 = vld [vmem:[%s1023 + $0x8] sm:$0xff]
    %v1184 = vadd.f32 %v1180, %v1182
    %v1185 = vadd.f32 %v1181, %v1183
    %v1186 = vld [vmem:[#allocation4 + $0x90] sm:$0xff]
    %v1187 = vld [vmem:[#allocation4 + $0xd0] sm:$0xff]
    %v1188 = vmul.f32 %v1184, %v1186
    %v1189 = vmul.f32 %v1185, %v1187
    %v1190 = vadd.f32 %v1188, %v1189
    %v1191 = vrot.slane %v1190, 4
    %v1192 = vadd.f32 %v1190, %v1191
    %v1193 = vrot.slane %v1192, 2
    %v1194 = vadd.f32 %v1192, %v1193
    %v1195 = vrot.slane %v1194, 1
    %v1196 = vadd.f32 %v1194, %v1195
    %v1197 = vld [vmem:[%s1036] sm:$0xff]
    %v1198 = vld [vmem:[%s1036 + $0x8] sm:$0xff]
    %v1199 = vmul.f32 %v1197, %v1184
    %v1200 = vmul.f32 %v1198, %v1185
    %v1201 = vld [vmem:[%s1047] sm:$0xff]
    %v1202 = vld [vmem:[%s1047 + $0x8] sm:$0xff]
    %v1203 = vadd.f32 %v1199, %v1201
    %v1204 = vadd.f32 %v1200, %v1202
    %v1205 = vld [vmem:[#allocation4 + $0x98] sm:$0xff]
    %v1206 = vld [vmem:[#allocation4 + $0xd8] sm:$0xff]
    %v1207 = vmul.f32 %v1203, %v1205
    %v1208 = vmul.f32 %v1204, %v1206
    %v1209 = vadd.f32 %v1207, %v1208
    %v1210 = vrot.slane %v1209, 4
    %v1211 = vadd.f32 %v1209, %v1210
    %v1212 = vrot.slane %v1211, 2
    %v1213 = vadd.f32 %v1211, %v1212
    %v1214 = vrot.slane %v1213, 1
    %v1215 = vadd.f32 %v1213, %v1214
    %v1216 = vld [vmem:[%s1060] sm:$0xff]
    %v1217 = vld [vmem:[%s1060 + $0x8] sm:$0xff]
    %v1218 = vmul.f32 %v1216, %v1203
    %v1219 = vmul.f32 %v1217, %v1204
    %v1220 = vld [vmem:[%s1071] sm:$0xff]
    %v1221 = vld [vmem:[%s1071 + $0x8] sm:$0xff]
    %v1222 = vadd.f32 %v1218, %v1220
    %v1223 = vadd.f32 %v1219, %v1221
    %v1224 = vld [vmem:[#allocation4 + $0xa0] sm:$0xff]
    %v1225 = vld [vmem:[#allocation4 + $0xe0] sm:$0xff]
    %v1226 = vmul.f32 %v1222, %v1224
    %v1227 = vmul.f32 %v1223, %v1225
    %v1228 = vadd.f32 %v1226, %v1227
    %v1229 = vrot.slane %v1228, 4
    %v1230 = vadd.f32 %v1228, %v1229
    %v1231 = vrot.slane %v1230, 2
    %v1232 = vadd.f32 %v1230, %v1231
    %v1233 = vrot.slane %v1232, 1
    %v1234 = vadd.f32 %v1232, %v1233
    %v1235 = vld [vmem:[%s1084] sm:$0xff]
    %v1236 = vld [vmem:[%s1084 + $0x8] sm:$0xff]
    %v1237 = vmul.f32 %v1235, %v1222
    %v1238 = vmul.f32 %v1236, %v1223
    %v1239 = vld [vmem:[%s1095] sm:$0xff]
    %v1240 = vld [vmem:[%s1095 + $0x8] sm:$0xff]
    %v1241 = vadd.f32 %v1237, %v1239
    %v1242 = vadd.f32 %v1238, %v1240
    %v1243 = vld [vmem:[#allocation4 + $0xa8] sm:$0xff]
    %v1244 = vld [vmem:[#allocation4 + $0xe8] sm:$0xff]
    %v1245 = vmul.f32 %v1241, %v1243
    %v1246 = vmul.f32 %v1242, %v1244
    %v1247 = vadd.f32 %v1245, %v1246
    %v1248 = vrot.slane %v1247, 4
    %v1249 = vadd.f32 %v1247, %v1248
    %v1250 = vrot.slane %v1249, 2
    %v1251 = vadd.f32 %v1249, %v1250
    %v1252 = vrot.slane %v1251, 1
    %v1253 = vadd.f32 %v1251, %v1252
    %v1254 = vld [vmem:[%s1108] sm:$0xff]
    %v1255 = vld [vmem:[%s1108 + $0x8] sm:$0xff]
    %v1256 = vmul.f32 %v1254, %v1241
    %v1257 = vmul.f32 %v1255, %v1242
    %v1258 = vld [vmem:[%s1119] sm:$0xff]
    %v1259 = vld [vmem:[%s1119 + $0x8] sm:$0xff]
    %v1260 = vadd.f32 %v1256, %v1258
    %v1261 = vadd.f32 %v1257, %v1259
    %v1262 = vld [vmem:[#allocation4 + $0xb0] sm:$0xff]
    %v1263 = vld [vmem:[#allocation4 + $0xf0] sm:$0xff]
    %v1264 = vmul.f32 %v1260, %v1262
    %v1265 = vmul.f32 %v1261, %v1263
    %v1266 = vadd.f32 %v1264, %v1265
    %v1267 = vrot.slane %v1266, 4
    %v1268 = vadd.f32 %v1266, %v1267
    %v1269 = vrot.slane %v1268, 2
    %v1270 = vadd.f32 %v1268, %v1269
    %v1271 = vrot.slane %v1270, 1
    %v1272 = vadd.f32 %v1270, %v1271
    %v1273 = vld [vmem:[%s1132] sm:$0xff]
    %v1274 = vld [vmem:[%s1132 + $0x8] sm:$0xff]
    %v1275 = vmul.f32 %v1273, %v1260
    %v1276 = vmul.f32 %v1274, %v1261
    %v1277 = vld [vmem:[%s1143] sm:$0xff]
    %v1278 = vld [vmem:[%s1143 + $0x8] sm:$0xff]
    %v1279 = vadd.f32 %v1275, %v1277
    %v1280 = vadd.f32 %v1276, %v1278
    %v1281 = vld [vmem:[#allocation4 + $0xb8] sm:$0xff]
    %v1282 = vld [vmem:[#allocation4 + $0xf8] sm:$0xff]
    %v1283 = vmul.f32 %v1279, %v1281
    %v1284 = vmul.f32 %v1280, %v1282
    %v1285 = vadd.f32 %v1283, %v1284
    %v1286 = vrot.slane %v1285, 4
    %v1287 = vadd.f32 %v1285, %v1286
    %v1288 = vrot.slane %v1287, 2
    %v1289 = vadd.f32 %v1287, %v1288
    %v1290 = vrot.slane %v1289, 1
    %v1291 = vadd.f32 %v1289, %v1290
    %vm1292 = vcmask 1040384
    %v1293 = vsel %vm1292, %v1158, %v1177
    %vm1294 = vcmask 1041408
    %v1295 = vsel %vm1294, %v1293, %v1196
    %vm1296 = vcmask 1042432
    %v1297 = vsel %vm1296, %v1295, %v1215
    %vm1298 = vcmask 1043456
    %v1299 = vsel %vm1298, %v1297, %v1234
    %vm1300 = vcmask 1044480
    %v1301 = vsel %vm1300, %v1299, %v1253
    %vm1302 = vcmask 1045504
    %v1303 = vsel %vm1302, %v1301, %v1272
    %vm1304 = vcmask 1046528
    %v1305 = vsel %vm1304, %v1303, %v1291
    %1307 = vrot.lane.b32.xlu0 %v1305, 64
    %v1308 = vpop.permute.xlu0 %1307
    %v1310 = vld [vmem:[%s1 + $0x3] sm:$0x1]
    %v1311 = vlaneseq
    %v1312 = vshrl.u32 %v1311, 7
    %v1313 = vsub.s32 0, %v1312
    %v1314 = vrot.slane %v1310, %v1313
    %v1315 = vmul.f32 %v322, %v1314
    %v1316 = vmul.f32 %v323, %v1314
    %v1317 = vadd.f32 %v1305, %v1315
    %v1318 = vadd.f32 %v1308, %v1316
    %v1319 = vmul.f32 %v145, 0.5
    %v1320 = vmul.f32 %v150, 0.5
    %v1321 = vtanh.pop %v1319
    %v1322 = vtanh.pop %v1320
    %v1323 = vadd.f32 %v1321, 1.0
    %v1324 = vadd.f32 %v1322, 1.0
    %v1325 = vmul.f32 %v1323, 0.5
    %v1326 = vmul.f32 %v1324, 0.5
    %v1327 = vmul.f32 %v145, %v1325
    %v1328 = vmul.f32 %v150, %v1326
    %1331 = vrot.lane.b32.xlu0 %v1327, 64
    %v1332 = vpop.permute.xlu0 %1331
    %1333 = vrot.lane.b32.xlu0 %v1328, 64
    %v1334 = vpop.permute.xlu0 %1333
    %v1337 = vmul.f32 %v1317, %v1332
    %v1338 = vmul.f32 %v1318, %v1334
    %v1339 = vld [vmem:[%s4] sm:$0xff]
    %v1340 = vld [vmem:[%s4 + $0x8] sm:$0xff]
    %v1341 = vld [vmem:[%s4 + $0x10] sm:$0xff]
    %v1342 = vld [vmem:[%s4 + $0x18] sm:$0xff]
    %v1343 = vld [vmem:[%s4 + $0x20] sm:$0xff]
    %v1344 = vld [vmem:[%s4 + $0x28] sm:$0xff]
    %v1345 = vld [vmem:[%s4 + $0x30] sm:$0xff]
    %v1346 = vld [vmem:[%s4 + $0x38] sm:$0xff]
    %v1348 = vsel %vm328, %v1337, 0
    %v1351 = vsel %vm328, %v1338, 0
    %1353 = vmatprep.subr.mxu0 0.0
    %1354 = vmatpush1.msra.mxu0 %v1339
    %1355 = vmatprep.subr.mxu0 0.0
    %1356 = vmatpush1.msra.mxu0 %v1340
    %1357 = vmatprep.subr.mxu0 0.0
    %1358 = vmatpush1.msra.mxu0 %v1341
    %1359 = vmatprep.subr.mxu0 0.0
    %1360 = vmatpush1.msra.mxu0 %v1342
    %1361 = vmatprep.subr.mxu0 0.0
    %1362 = vmatpush1.msra.mxu0 %v1343
    %1363 = vmatprep.subr.mxu0 0.0
    %1364 = vmatpush1.msra.mxu0 %v1344
    %1365 = vmatprep.subr.mxu0 0.0
    %1366 = vmatpush1.msra.mxu0 %v1345
    %1367 = vmatprep.subr.mxu0 0.0
    %1368 = vmatpush1.msra.mxu0 %v1346
    %1369 = vmatprep.subr.mxu0 0.0
    %1370 = vmatpush1.msra.mxu0 0.0
    %1371 = vmatprep.subr.mxu0 0.0
    %1372 = vmatpush1.msra.mxu0 0.0
    %1373 = vmatprep.subr.mxu0 0.0
    %1374 = vmatpush1.msra.mxu0 0.0
    %1375 = vmatprep.subr.mxu0 0.0
    %1376 = vmatpush1.msra.mxu0 0.0
    %1377 = vmatprep.subr.mxu0 0.0
    %1378 = vmatpush1.msra.mxu0 0.0
    %1379 = vmatprep.subr.mxu0 0.0
    %1380 = vmatpush1.msra.mxu0 0.0
    %1381 = vmatprep.subr.mxu0 0.0
    %1382 = vmatpush1.msra.mxu0 0.0
    %1383 = vmatprep.subr.mxu0 0.0
    %1384 = vmatpush1.msra.mxu0 0.0
    %1385 = vmatprep.subr.mxu0 0.0
    %1386 = vmatpush1.msra.mxu0 0.0
    %1387 = vmatprep.subr.mxu0 0.0
    %1388 = vmatpush1.msra.mxu0 0.0
    %1389 = vmatprep.subr.mxu0 0.0
    %1390 = vmatpush1.msra.mxu0 0.0
    %1391 = vmatprep.subr.mxu0 0.0
    %1392 = vmatpush1.msra.mxu0 0.0
    %1393 = vmatprep.subr.mxu0 0.0
    %1394 = vmatpush1.msra.mxu0 0.0
    %1395 = vmatprep.subr.mxu0 0.0
    %1396 = vmatpush1.msra.mxu0 0.0
    %1397 = vmatprep.subr.mxu0 0.0
    %1398 = vmatpush1.msra.mxu0 0.0
    %1399 = vmatprep.subr.mxu0 0.0
    %1400 = vmatpush1.msra.mxu0 0.0
    %1401 = vmatprep.subr.mxu0 0.0
    %1402 = vmatpush1.msra.mxu0 0.0
    %1403 = vmatprep.subr.mxu0 0.0
    %1404 = vmatpush1.msra.mxu0 0.0
    %1405 = vmatprep.subr.mxu0 0.0
    %1406 = vmatpush1.msra.mxu0 0.0
    %1407 = vmatprep.subr.mxu0 0.0
    %1408 = vmatpush1.msra.mxu0 0.0
    %1409 = vmatprep.subr.mxu0 0.0
    %1410 = vmatpush1.msra.mxu0 0.0
    %1411 = vmatprep.subr.mxu0 0.0
    %1412 = vmatpush1.msra.mxu0 0.0
    %1413 = vmatprep.subr.mxu0 0.0
    %1414 = vmatpush1.msra.mxu0 0.0
    %1415 = vmatprep.subr.mxu0 0.0
    %1416 = vmatpush1.msra.mxu0 0.0
    %1417 = vmatprep.mubr.f32.mxu0 0.0
    %1418 = vmatmul.mubr.f32.gmra.mrb[0].mxu0 %v1348
    %v1419 = vpop.f32.mrb[0].mxu0
    %v1420 = vadd.f32 0.0, %v1419
    %v1421 = vpop.f32.mrb[0].mxu0
    %1422 = vmatprep.mubr.f32.mxu0 0.0
    %1423 = vmatmul.mubr.f32.gmra.mrb[0].mxu0 %v1351
    %v1424 = vpop.f32.mrb[0].mxu0
    %v1425 = vadd.f32 0.0, %v1424
    %v1426 = vpop.f32.mrb[0].mxu0
    %1427 = vdwg.mxu0
    %v1428 = vadd.f32 %v41, %v1420
    %v1429 = vadd.f32 %v42, %v1425
    %v1430 = vsel %vm45, %v1428, 0.0
    %1431 = vadd.xlane.f32.xlu0 %v1430
    %v1432 = vpop.xlane.xlu0 %1431
    %v1433 = vsel %vm45, %v1429, 0.0
    %1434 = vadd.xlane.f32.xlu0 %v1433
    %v1435 = vpop.xlane.xlu0 %1434
    %v1436 = vmul.f32 %v1432, %v52
    %v1437 = vmul.f32 %v1435, %v52
    %v1438 = vsub.f32 %v1428, %v1436
    %v1439 = vsub.f32 %v1429, %v1437
    %v1440 = vmul.f32 %v1438, %v1438
    %v1441 = vmul.f32 %v1439, %v1439
    %v1442 = vsel %vm45, %v1440, 0.0
    %1443 = vadd.xlane.f32.xlu0 %v1442
    %v1444 = vpop.xlane.xlu0 %1443
    %v1445 = vsel %vm45, %v1441, 0.0
    %1446 = vadd.xlane.f32.xlu0 %v1445
    %v1447 = vpop.xlane.xlu0 %1446
    %v1448 = vmul.f32 %v1444, %v52
    %v1449 = vmul.f32 %v1447, %v52
    %v1450 = vadd.f32 %v1448, 1e-05
    %v1451 = vadd.f32 %v1449, 1e-05
    %v1452 = vrsqrt.pop %v1450
    %v1453 = vrsqrt.pop %v1451
    %v1454 = vmul.f32 %v1438, %v1452
    %v1455 = vmul.f32 %v1439, %v1453
    %v1456 = vld [vmem:[%s1 + $0x4] sm:$0x1]
    %v1457 = vlaneseq
    %v1458 = vshrl.u32 %v1457, 7
    %v1459 = vsub.s32 0, %v1458
    %v1460 = vrot.slane %v1456, %v1459
    %v1461 = vmul.f32 %v1454, %v1460
    %v1462 = vmul.f32 %v1455, %v1460
    %v1463 = vld [vmem:[%s1 + $0x5] sm:$0x1]
    %v1464 = vlaneseq
    %v1465 = vshrl.u32 %v1464, 7
    %v1466 = vsub.s32 0, %v1465
    %v1467 = vrot.slane %v1463, %v1466
    %v1468 = vadd.f32 %v1461, %v1467
    %v1469 = vadd.f32 %v1462, %v1467
    %v1470 = vld [vmem:[%s2 + $0x20] sm:$0xff]
    %v1471 = vld [vmem:[%s2 + $0x28] sm:$0xff]
    %v1472 = vld [vmem:[%s2 + $0x30] sm:$0xff]
    %v1473 = vld [vmem:[%s2 + $0x38] sm:$0xff]
    %v1474 = vld [vmem:[%s1 + $0x6] sm:$0x1]
    %v1475 = vlaneseq
    %v1476 = vshrl.u32 %v1475, 7
    %v1477 = vsub.s32 0, %v1476
    %v1478 = vrot.slane %v1474, %v1477
    %v1480 = vsel %vm45, %v1468, 0
    %v1483 = vsel %vm45, %v1469, 0
    %1485 = vmatprep.subr.mxu0 0.0
    %1486 = vmatpush1.msra.mxu0 %v1470
    %1487 = vmatprep.subr.mxu0 0.0
    %1488 = vmatpush1.msra.mxu0 %v1471
    %1489 = vmatprep.subr.mxu0 0.0
    %1490 = vmatpush1.msra.mxu0 %v1472
    %1491 = vmatprep.subr.mxu0 0.0
    %1492 = vmatpush1.msra.mxu0 %v1473
    %1493 = vmatprep.subr.mxu0 0.0
    %1494 = vmatpush1.msra.mxu0 0.0
    %1495 = vmatprep.subr.mxu0 0.0
    %1496 = vmatpush1.msra.mxu0 0.0
    %1497 = vmatprep.subr.mxu0 0.0
    %1498 = vmatpush1.msra.mxu0 0.0
    %1499 = vmatprep.subr.mxu0 0.0
    %1500 = vmatpush1.msra.mxu0 0.0
    %1501 = vmatprep.subr.mxu0 0.0
    %1502 = vmatpush1.msra.mxu0 0.0
    %1503 = vmatprep.subr.mxu0 0.0
    %1504 = vmatpush1.msra.mxu0 0.0
    %1505 = vmatprep.subr.mxu0 0.0
    %1506 = vmatpush1.msra.mxu0 0.0
    %1507 = vmatprep.subr.mxu0 0.0
    %1508 = vmatpush1.msra.mxu0 0.0
    %1509 = vmatprep.subr.mxu0 0.0
    %1510 = vmatpush1.msra.mxu0 0.0
    %1511 = vmatprep.subr.mxu0 0.0
    %1512 = vmatpush1.msra.mxu0 0.0
    %1513 = vmatprep.subr.mxu0 0.0
    %1514 = vmatpush1.msra.mxu0 0.0
    %1515 = vmatprep.subr.mxu0 0.0
    %1516 = vmatpush1.msra.mxu0 0.0
    %1517 = vmatprep.subr.mxu0 0.0
    %1518 = vmatpush1.msra.mxu0 0.0
    %1519 = vmatprep.subr.mxu0 0.0
    %1520 = vmatpush1.msra.mxu0 0.0
    %1521 = vmatprep.subr.mxu0 0.0
    %1522 = vmatpush1.msra.mxu0 0.0
    %1523 = vmatprep.subr.mxu0 0.0
    %1524 = vmatpush1.msra.mxu0 0.0
    %1525 = vmatprep.subr.mxu0 0.0
    %1526 = vmatpush1.msra.mxu0 0.0
    %1527 = vmatprep.subr.mxu0 0.0
    %1528 = vmatpush1.msra.mxu0 0.0
    %1529 = vmatprep.subr.mxu0 0.0
    %1530 = vmatpush1.msra.mxu0 0.0
    %1531 = vmatprep.subr.mxu0 0.0
    %1532 = vmatpush1.msra.mxu0 0.0
    %1533 = vmatprep.subr.mxu0 0.0
    %1534 = vmatpush1.msra.mxu0 0.0
    %1535 = vmatprep.subr.mxu0 0.0
    %1536 = vmatpush1.msra.mxu0 0.0
    %1537 = vmatprep.subr.mxu0 0.0
    %1538 = vmatpush1.msra.mxu0 0.0
    %1539 = vmatprep.subr.mxu0 0.0
    %1540 = vmatpush1.msra.mxu0 0.0
    %1541 = vmatprep.subr.mxu0 0.0
    %1542 = vmatpush1.msra.mxu0 0.0
    %1543 = vmatprep.subr.mxu0 0.0
    %1544 = vmatpush1.msra.mxu0 0.0
    %1545 = vmatprep.subr.mxu0 0.0
    %1546 = vmatpush1.msra.mxu0 0.0
    %1547 = vmatprep.subr.mxu0 0.0
    %1548 = vmatpush1.msra.mxu0 0.0
    %1549 = vmatprep.mubr.f32.mxu0 0.0
    %1550 = vmatmul.mubr.f32.gmra.mrb[0].mxu0 %v1480
    %v1551 = vpop.f32.mrb[0].mxu0
    %v1552 = vadd.f32 %v1478, %v1551
    %v1553 = vpop.f32.mrb[0].mxu0
    %1554 = vmatprep.mubr.f32.mxu0 0.0
    %1555 = vmatmul.mubr.f32.gmra.mrb[0].mxu0 %v1483
    %v1556 = vpop.f32.mrb[0].mxu0
    %v1557 = vadd.f32 %v1478, %v1556
    %v1558 = vpop.f32.mrb[0].mxu0
    %1559 = vdwg.mxu0
    %v1560 = vmul.f32 %v1552, 0.5
    %v1561 = vmul.f32 %v1557, 0.5
    %v1562 = vmul.f32 %v1552, 0.044715
    %v1563 = vmul.f32 %v1557, 0.044715
    %v1564 = vmul.f32 %v1562, %v1552
    %v1565 = vmul.f32 %v1563, %v1557
    %v1566 = vmul.f32 %v1564, %v1552
    %v1567 = vmul.f32 %v1565, %v1557
    %v1568 = vadd.f32 %v1552, %v1566
    %v1569 = vadd.f32 %v1557, %v1567
    %v1570 = vmul.f32 %v1568, 0.7978846
    %v1571 = vmul.f32 %v1569, 0.7978846
    %v1572 = vtanh.pop %v1570
    %v1573 = vtanh.pop %v1571
    %v1574 = vadd.f32 %v1572, 1.0
    %v1575 = vadd.f32 %v1573, 1.0
    %v1576 = vmul.f32 %v1560, %v1574
    %v1577 = vmul.f32 %v1561, %v1575
    %v1578 = vld [vmem:[%s4 + $0x40] sm:$0xff]
    %v1579 = vld [vmem:[%s4 + $0x48] sm:$0xff]
    %v1580 = vld [vmem:[%s4 + $0x50] sm:$0xff]
    %v1581 = vld [vmem:[%s4 + $0x58] sm:$0xff]
    %v1582 = vld [vmem:[%s4 + $0x60] sm:$0xff]
    %v1583 = vld [vmem:[%s4 + $0x68] sm:$0xff]
    %v1584 = vld [vmem:[%s4 + $0x70] sm:$0xff]
    %v1585 = vld [vmem:[%s4 + $0x78] sm:$0xff]
    %v1586 = vld [vmem:[%s4 + $0x80] sm:$0xff]
    %v1587 = vld [vmem:[%s4 + $0x88] sm:$0xff]
    %v1588 = vld [vmem:[%s4 + $0x90] sm:$0xff]
    %v1589 = vld [vmem:[%s4 + $0x98] sm:$0xff]
    %v1590 = vld [vmem:[%s4 + $0xa0] sm:$0xff]
    %v1591 = vld [vmem:[%s4 + $0xa8] sm:$0xff]
    %v1592 = vld [vmem:[%s4 + $0xb0] sm:$0xff]
    %v1593 = vld [vmem:[%s4 + $0xb8] sm:$0xff]
    %v1594 = vld [vmem:[%s1 + $0x7] sm:$0x1]
    %v1595 = vlaneseq
    %v1596 = vshrl.u32 %v1595, 7
    %v1597 = vsub.s32 0, %v1596
    %v1598 = vrot.slane %v1594, %v1597
    %1599 = vmatprep.subr.mxu0 0.0
    %1600 = vmatpush1.msra.mxu0 %v1578
    %1601 = vmatprep.subr.mxu0 0.0
    %1602 = vmatpush1.msra.mxu0 %v1579
    %1603 = vmatprep.subr.mxu0 0.0
    %1604 = vmatpush1.msra.mxu0 %v1580
    %1605 = vmatprep.subr.mxu0 0.0
    %1606 = vmatpush1.msra.mxu0 %v1581
    %1607 = vmatprep.subr.mxu0 0.0
    %1608 = vmatpush1.msra.mxu0 %v1582
    %1609 = vmatprep.subr.mxu0 0.0
    %1610 = vmatpush1.msra.mxu0 %v1583
    %1611 = vmatprep.subr.mxu0 0.0
    %1612 = vmatpush1.msra.mxu0 %v1584
    %1613 = vmatprep.subr.mxu0 0.0
    %1614 = vmatpush1.msra.mxu0 %v1585
    %1615 = vmatprep.subr.mxu0 0.0
    %1616 = vmatpush1.msra.mxu0 %v1586
    %1617 = vmatprep.subr.mxu0 0.0
    %1618 = vmatpush1.msra.mxu0 %v1587
    %1619 = vmatprep.subr.mxu0 0.0
    %1620 = vmatpush1.msra.mxu0 %v1588
    %1621 = vmatprep.subr.mxu0 0.0
    %1622 = vmatpush1.msra.mxu0 %v1589
    %1623 = vmatprep.subr.mxu0 0.0
    %1624 = vmatpush1.msra.mxu0 %v1590
    %1625 = vmatprep.subr.mxu0 0.0
    %1626 = vmatpush1.msra.mxu0 %v1591
    %1627 = vmatprep.subr.mxu0 0.0
    %1628 = vmatpush1.msra.mxu0 %v1592
    %1629 = vmatprep.subr.mxu0 0.0
    %1630 = vmatpush1.msra.mxu0 %v1593
    %1631 = vmatprep.subr.mxu0 0.0
    %1632 = vmatpush1.msra.mxu0 0.0
    %1633 = vmatprep.subr.mxu0 0.0
    %1634 = vmatpush1.msra.mxu0 0.0
    %1635 = vmatprep.subr.mxu0 0.0
    %1636 = vmatpush1.msra.mxu0 0.0
    %1637 = vmatprep.subr.mxu0 0.0
    %1638 = vmatpush1.msra.mxu0 0.0
    %1639 = vmatprep.subr.mxu0 0.0
    %1640 = vmatpush1.msra.mxu0 0.0
    %1641 = vmatprep.subr.mxu0 0.0
    %1642 = vmatpush1.msra.mxu0 0.0
    %1643 = vmatprep.subr.mxu0 0.0
    %1644 = vmatpush1.msra.mxu0 0.0
    %1645 = vmatprep.subr.mxu0 0.0
    %1646 = vmatpush1.msra.mxu0 0.0
    %1647 = vmatprep.subr.mxu0 0.0
    %1648 = vmatpush1.msra.mxu0 0.0
    %1649 = vmatprep.subr.mxu0 0.0
    %1650 = vmatpush1.msra.mxu0 0.0
    %1651 = vmatprep.subr.mxu0 0.0
    %1652 = vmatpush1.msra.mxu0 0.0
    %1653 = vmatprep.subr.mxu0 0.0
    %1654 = vmatpush1.msra.mxu0 0.0
    %1655 = vmatprep.subr.mxu0 0.0
    %1656 = vmatpush1.msra.mxu0 0.0
    %1657 = vmatprep.subr.mxu0 0.0
    %1658 = vmatpush1.msra.mxu0 0.0
    %1659 = vmatprep.subr.mxu0 0.0
    %1660 = vmatpush1.msra.mxu0 0.0
    %1661 = vmatprep.subr.mxu0 0.0
    %1662 = vmatpush1.msra.mxu0 0.0
    %1663 = vmatprep.mubr.f32.mxu0 0.0
    %1664 = vmatmul.mubr.f32.gmra.mrb[0].mxu0 %v1576
    %v1665 = vpop.f32.mrb[0].mxu0
    %v1666 = vadd.f32 %v1598, %v1665
    %v1667 = vpop.f32.mrb[0].mxu0
    %1668 = vmatprep.mubr.f32.mxu0 0.0
    %1669 = vmatmul.mubr.f32.gmra.mrb[0].mxu0 %v1577
    %v1670 = vpop.f32.mrb[0].mxu0
    %v1671 = vadd.f32 %v1598, %v1670
    %v1672 = vpop.f32.mrb[0].mxu0
    %1673 = vdwg.mxu0
    %v1674 = vadd.f32 %v1428, %v1666
    %v1675 = vadd.f32 %v1429, %v1671
    %1676 = vst.msk [vmem:[#allocation8] sm:$0xff] %vm45, %v1674
    %1677 = vst.msk [vmem:[#allocation8 + $0x8] sm:$0xff] %vm45, %v1675
    // Predicated region
    $region34: #{tpu_custom_call.1} parent=1 // pred_check
      _
    $region35: #{tpu_custom_call.1} parent=1 // pred_check_branch
      %1679 = sbr.rel (0) target = $region37
    $region36: #{tpu_custom_call.1} parent=1 // pred_region
      %s1681 = ssub.s32 256, 256
      %1682 = vsyncadd [#allocation7], %s1681
      %s1683 = sshll.u32 [#allocation8], 4
      %s1684 = int_to_ptr.vmem [resolvable:$true] %s1683
      %1689 = dma.vmem_to_hbm [thread:$0]  %s1684, 256, %s7, [#allocation7], 128, 128, 8
    $region37: #{tpu_custom_call.1} parent=1 // pred_fallthru
      _
    // Predicated region
    $region38: #{tpu_custom_call.1} parent=1 // pred_check
      _
    $region39: #{tpu_custom_call.1} parent=1 // pred_check_branch
      %1691 = sbr.rel (0) target = $region41
    $region40: #{tpu_custom_call.1} parent=1 // pred_region
      %1692 = dma.done [#allocation7], 256
    $region41: #{tpu_custom_call.1} parent=1 // pred_fallthru
      _
    %1693 = vsyncpa [#allocation6], 1
    %1694 = vsyncpa [#allocation7], 1

</llo_original>
